<compile_context>
chip_gen: v7x
topology: tpu7x:2x2x1
jax: 0.10.0
libtpu: 0.0.40
codegen_flags: <defaults>
</compile_context>

<pallas_src>
import functools

import jax
import jax.numpy as jnp
from jax.experimental import pallas as pl
from jax.experimental.pallas import tpu as pltpu

BN_EPS = 1e-5


def _round_up(x, m):
    return ((x + m - 1) // m) * m


def _vmem_limit_bytes():
    """Generation-aware VMEM limit: ~3/4 of physical (96 MiB on v5e/v6e's 128 MiB,
    48 MiB on v7x's 64 MiB), with a conservative fallback if the query fails."""
    cap = 64 * 1024 * 1024
    try:
        cap = int(getattr(pltpu.get_tpu_info(), "vmem_capacity_bytes", cap))
    except Exception:
        pass
    return max(32 * 1024 * 1024, min(cap * 3 // 4, 96 * 1024 * 1024))


# --------------------------------------------------------------------------------------
# Fused fast path: direct conv + BN (two-pass stats) + ReLU, all resident in VMEM.
# --------------------------------------------------------------------------------------
def _fused_conv_bn_relu_kernel(x_ref, w_ref, mask_ref, gamma_ref, beta_ref, out_ref,
                               *, kh, kw, wp, mv, inv_count):
    """x_ref   : (Cin, Win)          bf16  zero-padded input, padded spatial flattened on lanes
       w_ref   : (KH*KW, Cout, Cin)  bf16  per-tap weight matrices
       mask_ref: (1, Mv)             f32   1.0 at valid (strided, in-bounds) output positions
       gamma/beta: (Cout, 1)         f32
       out_ref : (Cout, Mv)          f32   conv->bn->relu on the full padded frame"""
    xf = x_ref[...]
    cout = w_ref.shape[1]
    acc = jnp.zeros((cout, mv), jnp.float32)
    for t in range(kh * kw):                       # static unroll over KH*KW taps
        shift = (t // kw) * wp + (t % kw)
        acc = acc + jnp.dot(w_ref[t], xf[:, shift:shift + mv],
                            preferred_element_type=jnp.float32)

    valid = mask_ref[...] > 0.5                    # (1, Mv)
    masked = jnp.where(valid, acc, 0.0)
    mean = jnp.sum(masked, axis=1, keepdims=True) * inv_count          # (Cout, 1)
    centered = jnp.where(valid, acc - mean, 0.0)                       # exact two-pass var
    var = jnp.sum(centered * centered, axis=1, keepdims=True) * inv_count
    scale = gamma_ref[...] * jax.lax.rsqrt(var + BN_EPS)
    bias = beta_ref[...] - mean * scale
    out_ref[...] = jnp.maximum(acc * scale + bias, 0.0)


# --------------------------------------------------------------------------------------
# Tiled fallback (large problems): phase 1 = conv + per-tile stats, phase 2 = BN + ReLU.
# --------------------------------------------------------------------------------------
def _conv_stats_kernel(w_ref, p_ref, conv_ref, stats_ref, *, m_total, tile_m):
    t = pl.program_id(0)
    acc = jnp.dot(w_ref[...], p_ref[...], preferred_element_type=jnp.float32)  # (Cout, tile_m)
    conv_ref[...] = acc.astype(conv_ref.dtype)                                 # bf16 intermediate
    # Per-tile (sum, M2) with the ragged tail masked in-kernel (no jnp.pad of patches).
    n_valid = jnp.minimum(tile_m, m_total - t * tile_m)
    lane = jax.lax.broadcasted_iota(jnp.int32, (1, tile_m), 1)
    valid = lane < n_valid
    cnt = n_valid.astype(jnp.float32)
    s = jnp.sum(jnp.where(valid, acc, 0.0), axis=1, keepdims=True)             # (Cout, 1)
    mu = s / cnt
    c = jnp.where(valid, acc - mu, 0.0)
    m2 = jnp.sum(c * c, axis=1, keepdims=True)                                 # (Cout, 1)
    stats_ref[...] = jnp.concatenate([s, m2], axis=1)[None]                    # (1, Cout, 2)


def _bn_relu_kernel(conv_ref, scale_ref, bias_ref, out_ref):
    y = conv_ref[...].astype(jnp.float32) * scale_ref[...] + bias_ref[...]
    out_ref[...] = jnp.maximum(y, 0.0)


def _im2col_t(x_nchw, kh, kw, padding, stride):
    """Transposed im2col for the tiled fallback only: (K, M) with K=(Cin,KH,KW) and the
    large M=(N,OH,OW) axis last (lane-dense blocks).  The fused path does NOT use this."""
    n, cin, h, w = x_nchw.shape
    oh = (h + 2 * padding - kh) // stride + 1
    ow = (w + 2 * padding - kw) // stride + 1
    x = jnp.pad(x_nchw, ((0, 0), (0, 0), (padding, padding), (padding, padding)))
    x = jnp.transpose(x, (1, 0, 2, 3)).astype(jnp.bfloat16)
    slabs = [
        x[:, :, i:i + (oh - 1) * stride + 1:stride, j:j + (ow - 1) * stride + 1:stride]
        for i in range(kh) for j in range(kw)
    ]
    p = jnp.stack(slabs, axis=1)                       # (Cin, KH*KW, N, OH, OW)
    return p.reshape(cin * kh * kw, n * oh * ow), (n, oh, ow)


def _pick_tile_m(m, k, cout, budget_bytes):
    """Largest lane (M) tile whose double-buffered working set fits the budget while
    leaving >= 4 grid steps (>= 2 per TensorCore with megacore 'parallel' semantics)."""
    tile = 256
    for t in (512, 1024, 2048, 4096):
        work = 2 * (k * t * 2) + 2 * (cout * t * 2) + 2 * (cout * t * 4)
        if m >= 4 * t and work <= budget_bytes:
            tile = t
    return tile


# --------------------------------------------------------------------------------------
# Public entry point.
# --------------------------------------------------------------------------------------
@functools.partial(jax.jit, static_argnames=("padding", "stride"))
def conv_bn_relu(x_nchw, weight, gamma, beta, *, padding, stride):
    """weight: (Cout, Cin, KH, KW) PyTorch layout; gamma/beta: (Cout,). NCHW in/out."""
    n, cin, h, w = x_nchw.shape
    cout, _, kh, kw = weight.shape
    oh = (h + 2 * padding - kh) // stride + 1
    ow = (w + 2 * padding - kw) // stride + 1
    hp, wp = h + 2 * padding, w + 2 * padding

    vmem_limit = _vmem_limit_bytes()
    gamma_c = gamma.astype(jnp.float32).reshape(cout, 1)
    beta_c = beta.astype(jnp.float32).reshape(cout, 1)

    # ---------------- fused single-kernel fast path ----------------
    m_full = n * hp * wp                        # positions in the padded frame
    mv = _round_up(m_full, 128)                 # lane-dense compute width
    max_shift = (kh - 1) * wp + (kw - 1)
    win = _round_up(mv + max_shift, 128)        # input slab width incl. tap halo
    fused_bytes = cin * win * 2 + 3 * cout * mv * 4 + mv * 4 + (1 << 16)

    if fused_bytes <= vmem_limit // 2:
        # One pass over the raw input (no KH*KW im2col blow-up, no big jnp.pad).
        xpad = jnp.pad(x_nchw, ((0, 0), (0, 0), (padding, padding), (padding, padding)))
        x_flat = jnp.transpose(xpad, (1, 0, 2, 3)).astype(jnp.bfloat16).reshape(cin, m_full)
        x_flat = jnp.pad(x_flat, ((0, 0), (0, win - m_full)))          # zero halo + alignment

        w_taps = jnp.transpose(weight, (2, 3, 0, 1)).reshape(kh * kw, cout, cin)
        w_taps = w_taps.astype(jnp.bfloat16)

        # Valid (strided, in-bounds) output positions inside the padded frame.
        idx = jnp.arange(mv, dtype=jnp.int32)
        rem = idx % (hp * wp)
        r, c = rem // wp, rem % wp
        valid = ((idx < m_full)
                 & (r % stride == 0) & (r // stride < oh)
                 & (c % stride == 0) & (c // stride < ow))
        mask = valid.astype(jnp.float32).reshape(1, mv)

        kernel = functools.partial(
            _fused_conv_bn_relu_kernel, kh=kh, kw=kw, wp=wp, mv=mv,
            inv_count=1.0 / float(n * oh * ow))
        vspec = pl.BlockSpec(memory_space=pltpu.MemorySpace.VMEM)
        out_flat = pl.pallas_call(
            kernel,
            out_shape=jax.ShapeDtypeStruct((cout, mv), jnp.float32),
            in_specs=[vspec] * 5,
            out_specs=vspec,
            compiler_params=pltpu.CompilerParams(vmem_limit_bytes=vmem_limit),
        )(x_flat, w_taps, mask, gamma_c, beta_c)

        # Tiny XLA relayout of the small result back to PyTorch NCHW.
        out = out_flat[:, :m_full].reshape(cout, n, hp, wp)
        out = out[:, :, :(oh - 1) * stride + 1:stride, :(ow - 1) * stride + 1:stride]
        return jnp.transpose(out, (1, 0, 2, 3))

    # ---------------- tiled fallback (problems too large for the fused path) ----------
    # Note: im2col kept here for robustness; in-kernel tap construction (as in the fused
    # path) is the planned next step to cut input HBM traffic for this path too.
    patches_t, _ = _im2col_t(x_nchw, kh, kw, padding, stride)
    k, m = patches_t.shape
    tile_m = _pick_tile_m(m, k, cout, vmem_limit // 2)
    num_tiles = _round_up(m, tile_m) // tile_m

    w_t = weight.reshape(cout, cin * kh * kw).astype(jnp.bfloat16)
    cparams = pltpu.CompilerParams(
        dimension_semantics=("parallel",),      # M tiles split across both TCs on v7x
        vmem_limit_bytes=vmem_limit,
    )

    conv_t, stats = pl.pallas_call(
        functools.partial(_conv_stats_kernel, m_total=m, tile_m=tile_m),
        out_shape=(
            jax.ShapeDtypeStruct((cout, m), jnp.bfloat16),            # bf16 intermediate
            jax.ShapeDtypeStruct((num_tiles, cout, 2), jnp.float32),  # packed (sum, M2)
        ),
        grid=(num_tiles,),
        in_specs=[
            pl.BlockSpec((cout, k), lambda t: (0, 0)),                # weights resident
            pl.BlockSpec((k, tile_m), lambda t: (0, t)),              # lane-dense patches
        ],
        out_specs=(
            pl.BlockSpec((cout, tile_m), lambda t: (0, t)),           # lane-dense conv tile
            pl.BlockSpec((1, cout, 2), lambda t: (t, 0, 0)),
        ),
        compiler_params=cparams,
    )(w_t, patches_t)

    # Chan's parallel-variance combination of the per-tile (sum, M2) partials (stable).
    counts = jnp.full((num_tiles, 1), float(tile_m), jnp.float32)
    counts = counts.at[-1, 0].set(float(m - (num_tiles - 1) * tile_m))
    t_sum, t_m2 = stats[:, :, 0], stats[:, :, 1]                      # (num_tiles, Cout)
    total = float(m)
    mean = jnp.sum(t_sum, axis=0) / total                             # (Cout,)
    t_mean = t_sum / counts
    var = (jnp.sum(t_m2, axis=0)
           + jnp.sum(counts * (t_mean - mean[None, :]) ** 2, axis=0)) / total
    g = gamma.astype(jnp.float32) * jax.lax.rsqrt(var + BN_EPS)
    scale = g.reshape(cout, 1)
    bias = (beta.astype(jnp.float32) - mean * g).reshape(cout, 1)

    out_t = pl.pallas_call(
        _bn_relu_kernel,
        out_shape=jax.ShapeDtypeStruct((cout, m), jnp.float32),
        grid=(num_tiles,),
        in_specs=[
            pl.BlockSpec((cout, tile_m), lambda t: (0, t)),
            pl.BlockSpec((cout, 1), lambda t: (0, 0)),
            pl.BlockSpec((cout, 1), lambda t: (0, 0)),
        ],
        out_specs=pl.BlockSpec((cout, tile_m), lambda t: (0, t)),
        compiler_params=cparams,
    )(conv_t, scale, bias)

    out = out_t.reshape(cout, n, oh, ow)
    return jnp.transpose(out, (1, 0, 2, 3))                           # NCHW


def _reference(x, weight, gamma, beta, *, padding, stride):
    conv = jax.lax.conv_general_dilated(
        x, weight, window_strides=(stride, stride),
        padding=[(padding, padding), (padding, padding)],
        dimension_numbers=("NCHW", "OIHW", "NCHW"))
    mean = jnp.mean(conv, axis=(0, 2, 3), keepdims=True)
    var = jnp.mean((conv - mean) ** 2, axis=(0, 2, 3), keepdims=True)
    y = (conv - mean) * jax.lax.rsqrt(var + BN_EPS)
    y = y * gamma.reshape(1, -1, 1, 1) + beta.reshape(1, -1, 1, 1)
    return jnp.maximum(y, 0.0)


if __name__ == "__main__":
    key = jax.random.PRNGKey(0)
    k_x, k_w = jax.random.split(key)

    # ConvBnReluLayer(inplanes=4, planes=8, kernel_size=3, padding=1, stride=1)
    inplanes, planes, ksize, padding, stride = 4, 8, 3, 1, 1
    N, H, W = 2, 16, 16

    x = jax.random.normal(k_x, (N, inplanes, H, W), dtype=jnp.float32)
    weight = jax.random.normal(k_w, (planes, inplanes, ksize, ksize),
                               dtype=jnp.float32) * 0.1
    gamma = jnp.ones((planes,), dtype=jnp.float32)   # BatchNorm2d default init
    beta = jnp.zeros((planes,), dtype=jnp.float32)

    out = conv_bn_relu(x, weight, gamma, beta, padding=padding, stride=stride)
    out = jax.block_until_ready(out)

    ref = _reference(x, weight, gamma, beta, padding=padding, stride=stride)
    assert out.shape == (N, planes, H, W)
    # bf16 MXU operands perturb the conv outputs / batch stats -> looser tolerance vs f32 ref.
    assert jnp.allclose(out, ref, rtol=3e-2, atol=3e-2), "mismatch vs reference"

    print("KERNEL_OK")
</pallas_src>

<mosaic_0001>
module attributes {stable_mosaic.version = 11 : i64} {
  func.func @_fused_conv_bn_relu_kernel(%arg0: memref<4x896xbf16, #tpu.memory_space<vmem>>, %arg1: memref<9x8x4xbf16, #tpu.memory_space<vmem>>, %arg2: memref<1x768xf32, #tpu.memory_space<vmem>>, %arg3: memref<8x1xf32, #tpu.memory_space<vmem>>, %arg4: memref<8x1xf32, #tpu.memory_space<vmem>>, %arg5: memref<8x768xf32, #tpu.memory_space<vmem>>) attributes {dimension_semantics = [], scalar_prefetch = 0 : i64, scratch_operands = 0 : i64, tpu.core_type = #tpu.core_type<tc>} {
    %c0 = arith.constant 0 : index
    %c0_0 = arith.constant 0 : index
    %0 = vector.load %arg0[%c0, %c0_0] : memref<4x896xbf16, #tpu.memory_space<vmem>>, vector<4x896xbf16>
    %cst = arith.constant 0.000000e+00 : f32
    %1 = vector.broadcast %cst : f32 to vector<8x768xf32>
    %c0_1 = arith.constant 0 : index
    %c0_2 = arith.constant 0 : index
    %c0_3 = arith.constant 0 : index
    %2 = vector.load %arg1[%c0_1, %c0_2, %c0_3] : memref<9x8x4xbf16, #tpu.memory_space<vmem>>, vector<1x8x4xbf16>
    %3 = vector.shape_cast %2 : vector<1x8x4xbf16> to vector<8x4xbf16>
    %4 = vector.extract_strided_slice %0 {offsets = [0, 0], sizes = [4, 768], strides = [1, 1]} : vector<4x896xbf16> to vector<4x768xbf16>
    %cst_4 = arith.constant dense<0.000000e+00> : vector<8x768xf32>
    %5 = tpu.matmul %3, %4, %cst_4 {dimension_numbers = #tpu.dot_dimension_numbers<[1], [0], [0], [1], [0, 0, 1, 1], [], []>} : vector<8x4xbf16>, vector<4x768xbf16>, vector<8x768xf32> -> vector<8x768xf32>
    %6 = arith.addf %1, %5 : vector<8x768xf32>
    %c1 = arith.constant 1 : index
    %c0_5 = arith.constant 0 : index
    %c0_6 = arith.constant 0 : index
    %7 = vector.load %arg1[%c1, %c0_5, %c0_6] : memref<9x8x4xbf16, #tpu.memory_space<vmem>>, vector<1x8x4xbf16>
    %8 = vector.shape_cast %7 : vector<1x8x4xbf16> to vector<8x4xbf16>
    %9 = vector.extract_strided_slice %0 {offsets = [0, 1], sizes = [4, 768], strides = [1, 1]} : vector<4x896xbf16> to vector<4x768xbf16>
    %cst_7 = arith.constant dense<0.000000e+00> : vector<8x768xf32>
    %10 = tpu.matmul %8, %9, %cst_7 {dimension_numbers = #tpu.dot_dimension_numbers<[1], [0], [0], [1], [0, 0, 1, 1], [], []>} : vector<8x4xbf16>, vector<4x768xbf16>, vector<8x768xf32> -> vector<8x768xf32>
    %11 = arith.addf %6, %10 : vector<8x768xf32>
    %c2 = arith.constant 2 : index
    %c0_8 = arith.constant 0 : index
    %c0_9 = arith.constant 0 : index
    %12 = vector.load %arg1[%c2, %c0_8, %c0_9] : memref<9x8x4xbf16, #tpu.memory_space<vmem>>, vector<1x8x4xbf16>
    %13 = vector.shape_cast %12 : vector<1x8x4xbf16> to vector<8x4xbf16>
    %14 = vector.extract_strided_slice %0 {offsets = [0, 2], sizes = [4, 768], strides = [1, 1]} : vector<4x896xbf16> to vector<4x768xbf16>
    %cst_10 = arith.constant dense<0.000000e+00> : vector<8x768xf32>
    %15 = tpu.matmul %13, %14, %cst_10 {dimension_numbers = #tpu.dot_dimension_numbers<[1], [0], [0], [1], [0, 0, 1, 1], [], []>} : vector<8x4xbf16>, vector<4x768xbf16>, vector<8x768xf32> -> vector<8x768xf32>
    %16 = arith.addf %11, %15 : vector<8x768xf32>
    %c3 = arith.constant 3 : index
    %c0_11 = arith.constant 0 : index
    %c0_12 = arith.constant 0 : index
    %17 = vector.load %arg1[%c3, %c0_11, %c0_12] : memref<9x8x4xbf16, #tpu.memory_space<vmem>>, vector<1x8x4xbf16>
    %18 = vector.shape_cast %17 : vector<1x8x4xbf16> to vector<8x4xbf16>
    %19 = vector.extract_strided_slice %0 {offsets = [0, 18], sizes = [4, 768], strides = [1, 1]} : vector<4x896xbf16> to vector<4x768xbf16>
    %cst_13 = arith.constant dense<0.000000e+00> : vector<8x768xf32>
    %20 = tpu.matmul %18, %19, %cst_13 {dimension_numbers = #tpu.dot_dimension_numbers<[1], [0], [0], [1], [0, 0, 1, 1], [], []>} : vector<8x4xbf16>, vector<4x768xbf16>, vector<8x768xf32> -> vector<8x768xf32>
    %21 = arith.addf %16, %20 : vector<8x768xf32>
    %c4 = arith.constant 4 : index
    %c0_14 = arith.constant 0 : index
    %c0_15 = arith.constant 0 : index
    %22 = vector.load %arg1[%c4, %c0_14, %c0_15] : memref<9x8x4xbf16, #tpu.memory_space<vmem>>, vector<1x8x4xbf16>
    %23 = vector.shape_cast %22 : vector<1x8x4xbf16> to vector<8x4xbf16>
    %24 = vector.extract_strided_slice %0 {offsets = [0, 19], sizes = [4, 768], strides = [1, 1]} : vector<4x896xbf16> to vector<4x768xbf16>
    %cst_16 = arith.constant dense<0.000000e+00> : vector<8x768xf32>
    %25 = tpu.matmul %23, %24, %cst_16 {dimension_numbers = #tpu.dot_dimension_numbers<[1], [0], [0], [1], [0, 0, 1, 1], [], []>} : vector<8x4xbf16>, vector<4x768xbf16>, vector<8x768xf32> -> vector<8x768xf32>
    %26 = arith.addf %21, %25 : vector<8x768xf32>
    %c5 = arith.constant 5 : index
    %c0_17 = arith.constant 0 : index
    %c0_18 = arith.constant 0 : index
    %27 = vector.load %arg1[%c5, %c0_17, %c0_18] : memref<9x8x4xbf16, #tpu.memory_space<vmem>>, vector<1x8x4xbf16>
    %28 = vector.shape_cast %27 : vector<1x8x4xbf16> to vector<8x4xbf16>
    %29 = vector.extract_strided_slice %0 {offsets = [0, 20], sizes = [4, 768], strides = [1, 1]} : vector<4x896xbf16> to vector<4x768xbf16>
    %cst_19 = arith.constant dense<0.000000e+00> : vector<8x768xf32>
    %30 = tpu.matmul %28, %29, %cst_19 {dimension_numbers = #tpu.dot_dimension_numbers<[1], [0], [0], [1], [0, 0, 1, 1], [], []>} : vector<8x4xbf16>, vector<4x768xbf16>, vector<8x768xf32> -> vector<8x768xf32>
    %31 = arith.addf %26, %30 : vector<8x768xf32>
    %c6 = arith.constant 6 : index
    %c0_20 = arith.constant 0 : index
    %c0_21 = arith.constant 0 : index
    %32 = vector.load %arg1[%c6, %c0_20, %c0_21] : memref<9x8x4xbf16, #tpu.memory_space<vmem>>, vector<1x8x4xbf16>
    %33 = vector.shape_cast %32 : vector<1x8x4xbf16> to vector<8x4xbf16>
    %34 = vector.extract_strided_slice %0 {offsets = [0, 36], sizes = [4, 768], strides = [1, 1]} : vector<4x896xbf16> to vector<4x768xbf16>
    %cst_22 = arith.constant dense<0.000000e+00> : vector<8x768xf32>
    %35 = tpu.matmul %33, %34, %cst_22 {dimension_numbers = #tpu.dot_dimension_numbers<[1], [0], [0], [1], [0, 0, 1, 1], [], []>} : vector<8x4xbf16>, vector<4x768xbf16>, vector<8x768xf32> -> vector<8x768xf32>
    %36 = arith.addf %31, %35 : vector<8x768xf32>
    %c7 = arith.constant 7 : index
    %c0_23 = arith.constant 0 : index
    %c0_24 = arith.constant 0 : index
    %37 = vector.load %arg1[%c7, %c0_23, %c0_24] : memref<9x8x4xbf16, #tpu.memory_space<vmem>>, vector<1x8x4xbf16>
    %38 = vector.shape_cast %37 : vector<1x8x4xbf16> to vector<8x4xbf16>
    %39 = vector.extract_strided_slice %0 {offsets = [0, 37], sizes = [4, 768], strides = [1, 1]} : vector<4x896xbf16> to vector<4x768xbf16>
    %cst_25 = arith.constant dense<0.000000e+00> : vector<8x768xf32>
    %40 = tpu.matmul %38, %39, %cst_25 {dimension_numbers = #tpu.dot_dimension_numbers<[1], [0], [0], [1], [0, 0, 1, 1], [], []>} : vector<8x4xbf16>, vector<4x768xbf16>, vector<8x768xf32> -> vector<8x768xf32>
    %41 = arith.addf %36, %40 : vector<8x768xf32>
    %c8 = arith.constant 8 : index
    %c0_26 = arith.constant 0 : index
    %c0_27 = arith.constant 0 : index
    %42 = vector.load %arg1[%c8, %c0_26, %c0_27] : memref<9x8x4xbf16, #tpu.memory_space<vmem>>, vector<1x8x4xbf16>
    %43 = vector.shape_cast %42 : vector<1x8x4xbf16> to vector<8x4xbf16>
    %44 = vector.extract_strided_slice %0 {offsets = [0, 38], sizes = [4, 768], strides = [1, 1]} : vector<4x896xbf16> to vector<4x768xbf16>
    %cst_28 = arith.constant dense<0.000000e+00> : vector<8x768xf32>
    %45 = tpu.matmul %43, %44, %cst_28 {dimension_numbers = #tpu.dot_dimension_numbers<[1], [0], [0], [1], [0, 0, 1, 1], [], []>} : vector<8x4xbf16>, vector<4x768xbf16>, vector<8x768xf32> -> vector<8x768xf32>
    %46 = arith.addf %41, %45 : vector<8x768xf32>
    %c0_29 = arith.constant 0 : index
    %c0_30 = arith.constant 0 : index
    %47 = vector.load %arg2[%c0_29, %c0_30] : memref<1x768xf32, #tpu.memory_space<vmem>>, vector<1x768xf32>
    %cst_31 = arith.constant 5.000000e-01 : f32
    %48 = vector.broadcast %cst_31 : f32 to vector<1x768xf32>
    %49 = arith.cmpf ogt, %47, %48 : vector<1x768xf32>
    %cst_32 = arith.constant 0.000000e+00 : f32
    %50 = vector.shape_cast %49 : vector<1x768xi1> to vector<1x768xi1>
    %51 = vector.broadcast %50 : vector<1x768xi1> to vector<8x768xi1>
    %52 = vector.broadcast %cst_32 : f32 to vector<8x768xf32>
    %53 = arith.select %51, %46, %52 : vector<8x768xi1>, vector<8x768xf32>
    %cst_33 = arith.constant dense<0.000000e+00> : vector<8xf32>
    %54 = vector.multi_reduction <add>, %53, %cst_33 [1] : vector<8x768xf32> to vector<8xf32>
    %55 = vector.shape_cast %54 : vector<8xf32> to vector<8x1xf32>
    %cst_34 = arith.constant 0.001953125 : f32
    %56 = vector.broadcast %cst_34 : f32 to vector<8x1xf32>
    %57 = arith.mulf %55, %56 : vector<8x1xf32>
    %58 = vector.broadcast %57 : vector<8x1xf32> to vector<8x768xf32>
    %59 = arith.subf %46, %58 : vector<8x768xf32>
    %cst_35 = arith.constant 0.000000e+00 : f32
    %60 = vector.shape_cast %49 : vector<1x768xi1> to vector<1x768xi1>
    %61 = vector.broadcast %60 : vector<1x768xi1> to vector<8x768xi1>
    %62 = vector.broadcast %cst_35 : f32 to vector<8x768xf32>
    %63 = arith.select %61, %59, %62 : vector<8x768xi1>, vector<8x768xf32>
    %64 = arith.mulf %63, %63 : vector<8x768xf32>
    %cst_36 = arith.constant dense<0.000000e+00> : vector<8xf32>
    %65 = vector.multi_reduction <add>, %64, %cst_36 [1] : vector<8x768xf32> to vector<8xf32>
    %66 = vector.shape_cast %65 : vector<8xf32> to vector<8x1xf32>
    %cst_37 = arith.constant 0.001953125 : f32
    %67 = vector.broadcast %cst_37 : f32 to vector<8x1xf32>
    %68 = arith.mulf %66, %67 : vector<8x1xf32>
    %c0_38 = arith.constant 0 : index
    %c0_39 = arith.constant 0 : index
    %69 = vector.load %arg3[%c0_38, %c0_39] : memref<8x1xf32, #tpu.memory_space<vmem>>, vector<8x1xf32>
    %cst_40 = arith.constant 9.99999974E-6 : f32
    %70 = vector.broadcast %cst_40 : f32 to vector<8x1xf32>
    %71 = arith.addf %68, %70 : vector<8x1xf32>
    %72 = math.rsqrt %71 : vector<8x1xf32>
    %73 = arith.mulf %69, %72 : vector<8x1xf32>
    %c0_41 = arith.constant 0 : index
    %c0_42 = arith.constant 0 : index
    %74 = vector.load %arg4[%c0_41, %c0_42] : memref<8x1xf32, #tpu.memory_space<vmem>>, vector<8x1xf32>
    %75 = arith.mulf %57, %73 : vector<8x1xf32>
    %76 = arith.subf %74, %75 : vector<8x1xf32>
    %77 = vector.broadcast %73 : vector<8x1xf32> to vector<8x768xf32>
    %78 = arith.mulf %46, %77 : vector<8x768xf32>
    %79 = vector.broadcast %76 : vector<8x1xf32> to vector<8x768xf32>
    %80 = arith.addf %78, %79 : vector<8x768xf32>
    %cst_43 = arith.constant 0.000000e+00 : f32
    %81 = vector.broadcast %cst_43 : f32 to vector<8x768xf32>
    %82 = arith.maximumf %80, %81 : vector<8x768xf32>
    %c0_44 = arith.constant 0 : index
    %c0_45 = arith.constant 0 : index
    %83 = vector.load %arg5[%c0_44, %c0_45] : memref<8x768xf32, #tpu.memory_space<vmem>>, vector<8x768xf32>
    tpu.vector_store %arg5[%c0_44, %c0_45], %82 {strides = array<i32>} : memref<8x768xf32, #tpu.memory_space<vmem>>, vector<8x768xf32>,
    return
  }
}

</mosaic_0001>

<llo_original>
// kernel: conv_bn_relu.1
$region0: #{conv_bn_relu.1}
  #allocation0 [shape = 'u32[]', space=smem, size = 0x4, offset = 0x4, fixed_abs, tag = 'smem constant byte address 0x4 - core index']
  #allocation1 [shape = 'u32[144,128]{1,0:T(1,128)}', space=vmem, size = 0x12000, scoped, tag = 'internal scratch']
  %s0 = inlined_call_operand.vmem [shape: bf16[4,896], index: 0, kind: input, shape index: {}]
  %s1 = inlined_call_operand.vmem [shape: bf16[9,8,4], index: 1, kind: input, shape index: {}]
  %s2 = inlined_call_operand.vmem [shape: f32[1,768], index: 2, kind: input, shape index: {}]
  %s3 = inlined_call_operand.vmem [shape: f32[8,1], index: 3, kind: input, shape index: {}]
  %s4 = inlined_call_operand.vmem [shape: f32[8,1], index: 4, kind: input, shape index: {}]
  %s5 = inlined_call_operand.vmem [shape: f32[8,768], index: 5, kind: output, shape index: {}]
  %s6 = sld [smem:[#allocation0]]
  $region30: #{conv_bn_relu.1} parent=0
    _
  %s8 = ssub.s32 1, %s6
  %s9 = scalar_select 0, %s8, %s6
  // Predicated region
  $region2: #{conv_bn_relu.1} parent=0 // pred_check
    _
  $region3: #{conv_bn_relu.1} parent=0 // pred_check_branch
    %11 = sbr.rel (0) target = $region5
  $region4: #{conv_bn_relu.1} parent=0 // pred_region
    _
  $region5: #{conv_bn_relu.1} parent=0 // pred_fallthru
    _
  // Predicated region
  $region6: #{conv_bn_relu.1} parent=0 // pred_check
    _
  $region7: #{conv_bn_relu.1} parent=0 // pred_check_branch
    %13 = sbr.rel (0) target = $region9
  $region8: #{conv_bn_relu.1} parent=0 // pred_region
    _
  $region9: #{conv_bn_relu.1} parent=0 // pred_fallthru
    _
  // Predicated region
  $region10: #{conv_bn_relu.1} parent=0 // pred_check
    _
  $region11: #{conv_bn_relu.1} parent=0 // pred_check_branch
    %15 = sbr.rel (0) target = $region13
  $region12: #{conv_bn_relu.1} parent=0 // pred_region
    _
  $region13: #{conv_bn_relu.1} parent=0 // pred_fallthru
    _
  // Predicated region
  $region14: #{conv_bn_relu.1} parent=0 // pred_check
    _
  $region15: #{conv_bn_relu.1} parent=0 // pred_check_branch
    %17 = sbr.rel (0) target = $region17
  $region16: #{conv_bn_relu.1} parent=0 // pred_region
    _
  $region17: #{conv_bn_relu.1} parent=0 // pred_fallthru
    _
  // Predicated region
  $region18: #{conv_bn_relu.1} parent=0 // pred_check
    _
  $region19: #{conv_bn_relu.1} parent=0 // pred_check_branch
    %19 = sbr.rel (0) target = $region21
  $region20: #{conv_bn_relu.1} parent=0 // pred_region
    _
  $region21: #{conv_bn_relu.1} parent=0 // pred_fallthru
    _
  %v21 = vld [vmem:[%s0] sm:$0xff]
  %v22 = vld [vmem:[%s0 + $0x8] sm:$0x3f]
  %v23 = vld [vmem:[%s1] sm:$0xf]
  %s24 = scalar_lea.vmem %s1, 4
  %v25 = vld [vmem:[%s24] sm:$0xf]
  %v28 = vcombine.high %v21, %v21
  %v30 = vunpack.c.l.s4 1983009808
  %v31 = vunpack.c.0.s8 %v30
  %v32 = vlaneseq
  %v33 = vshrl.u32 %v32, 7
  %v34 = vsub.s32 %v31, %v33
  %v35 = vrot.slane %v21, %v34
  %v37 = vunpack.c.l.s4 1983009808
  %v38 = vunpack.c.0.s8 %v37
  %v39 = vlaneseq
  %v40 = vshrl.u32 %v39, 7
  %v41 = vsub.s32 %v38, %v40
  %v42 = vrot.slane %v28, %v41
  %v43 = vcombine.high %v35, %v35
  %v44 = vcombine.high %v42, %v42
  %v45 = vcombine.high %v22, %v22
  %v47 = vunpack.c.l.s4 1983009808
  %v48 = vunpack.c.0.s8 %v47
  %v49 = vlaneseq
  %v50 = vshrl.u32 %v49, 7
  %v51 = vsub.s32 %v48, %v50
  %v52 = vrot.slane %v22, %v51
  %v54 = vunpack.c.l.s4 1983009808
  %v55 = vunpack.c.0.s8 %v54
  %v56 = vlaneseq
  %v57 = vshrl.u32 %v56, 7
  %v58 = vsub.s32 %v55, %v57
  %v59 = vrot.slane %v45, %v58
  %v60 = vcombine.high %v52, %v52
  %61 = vrot.lane.b32.xlu0 %v35, 127
  %v62 = vpop.permute.xlu0 %61
  %63 = vrot.lane.b32.xlu0 %v43, 127
  %v64 = vpop.permute.xlu0 %63
  %65 = vrot.lane.b32.xlu0 %v42, 127
  %v66 = vpop.permute.xlu0 %65
  %67 = vrot.lane.b32.xlu0 %v44, 127
  %v68 = vpop.permute.xlu0 %67
  %69 = vrot.lane.b32.xlu0 %v52, 127
  %v70 = vpop.permute.xlu0 %69
  %71 = vrot.lane.b32.xlu0 %v60, 127
  %v72 = vpop.permute.xlu0 %71
  %73 = vrot.lane.b32.xlu0 %v59, 127
  %v74 = vpop.permute.xlu0 %73
  %vm75 = vcmask 1039360
  %v76 = vsel %vm75, %v62, %v64
  %v77 = vsel %vm75, %v64, %v66
  %v78 = vsel %vm75, %v66, %v68
  %v79 = vsel %vm75, %v68, %v70
  %v80 = vsel %vm75, %v70, %v72
  %v81 = vsel %vm75, %v72, %v74
  %vm82 = vcmask 31744
  %v84 = vsel %vm82, %v25, 0
  %vm86 = vcmask 1041408
  %v88 = vsel %vm86, %v76, 0
  %v91 = vsel %vm86, %v77, 0
  %v94 = vsel %vm86, %v78, 0
  %v97 = vsel %vm86, %v79, 0
  %v100 = vsel %vm86, %v80, 0
  %v103 = vsel %vm86, %v81, 0
  %105 = vmatprep.subr.bf16.mxu0 %v91
  %106 = vmatpush1.bf16.msra.mxu0 %v88
  %107 = vmatprep.subr.bf16.mxu0 0
  %108 = vmatpush1.bf16.msra.mxu0 0
  %109 = vmatprep.subr.bf16.mxu0 0
  %110 = vmatpush1.bf16.msra.mxu0 0
  %111 = vmatprep.subr.bf16.mxu0 0
  %112 = vmatpush1.bf16.msra.mxu0 0
  %113 = vmatprep.subr.bf16.mxu0 0
  %114 = vmatpush1.bf16.msra.mxu0 0
  %115 = vmatprep.subr.bf16.mxu0 0
  %116 = vmatpush1.bf16.msra.mxu0 0
  %117 = vmatprep.subr.bf16.mxu0 0
  %118 = vmatpush1.bf16.msra.mxu0 0
  %119 = vmatprep.subr.bf16.mxu0 0
  %120 = vmatpush1.bf16.msra.mxu0 0
  %121 = vmatprep.subr.bf16.mxu0 0
  %122 = vmatpush1.bf16.msra.mxu0 0
  %123 = vmatprep.subr.bf16.mxu0 0
  %124 = vmatpush1.bf16.msra.mxu0 0
  %125 = vmatprep.subr.bf16.mxu0 0
  %126 = vmatpush1.bf16.msra.mxu0 0
  %127 = vmatprep.subr.bf16.mxu0 0
  %128 = vmatpush1.bf16.msra.mxu0 0
  %129 = vmatprep.subr.bf16.mxu0 0
  %130 = vmatpush1.bf16.msra.mxu0 0
  %131 = vmatprep.subr.bf16.mxu0 0
  %132 = vmatpush1.bf16.msra.mxu0 0
  %133 = vmatprep.subr.bf16.mxu0 0
  %134 = vmatpush1.bf16.msra.mxu0 0
  %135 = vmatprep.subr.bf16.mxu0 0
  %136 = vmatpush1.bf16.msra.mxu0 0
  %137 = vmatprep.mubr.bf16.mxu0 0
  %138 = vmatmul.mubr.bf16.gmra.mrb[0].mxu0 %v84
  %v139 = vpop.f32.mrb[0].mxu0
  %v140 = vadd.f32 0.0, %v139
  %v141 = vpop.f32.mrb[0].mxu0
  %v142 = vadd.f32 0.0, %v141
  %v143 = vpop.f32.mrb[0].mxu0
  %v144 = vpop.f32.mrb[0].mxu0
  %145 = vdwg.mxu0
  %146 = vmatprep.subr.bf16.mxu0 %v97
  %147 = vmatpush1.bf16.msra.mxu0 %v94
  %148 = vmatprep.subr.bf16.mxu0 0
  %149 = vmatpush1.bf16.msra.mxu0 0
  %150 = vmatprep.subr.bf16.mxu0 0
  %151 = vmatpush1.bf16.msra.mxu0 0
  %152 = vmatprep.subr.bf16.mxu0 0
  %153 = vmatpush1.bf16.msra.mxu0 0
  %154 = vmatprep.subr.bf16.mxu0 0
  %155 = vmatpush1.bf16.msra.mxu0 0
  %156 = vmatprep.subr.bf16.mxu0 0
  %157 = vmatpush1.bf16.msra.mxu0 0
  %158 = vmatprep.subr.bf16.mxu0 0
  %159 = vmatpush1.bf16.msra.mxu0 0
  %160 = vmatprep.subr.bf16.mxu0 0
  %161 = vmatpush1.bf16.msra.mxu0 0
  %162 = vmatprep.subr.bf16.mxu0 0
  %163 = vmatpush1.bf16.msra.mxu0 0
  %164 = vmatprep.subr.bf16.mxu0 0
  %165 = vmatpush1.bf16.msra.mxu0 0
  %166 = vmatprep.subr.bf16.mxu0 0
  %167 = vmatpush1.bf16.msra.mxu0 0
  %168 = vmatprep.subr.bf16.mxu0 0
  %169 = vmatpush1.bf16.msra.mxu0 0
  %170 = vmatprep.subr.bf16.mxu0 0
  %171 = vmatpush1.bf16.msra.mxu0 0
  %172 = vmatprep.subr.bf16.mxu0 0
  %173 = vmatpush1.bf16.msra.mxu0 0
  %174 = vmatprep.subr.bf16.mxu0 0
  %175 = vmatpush1.bf16.msra.mxu0 0
  %176 = vmatprep.subr.bf16.mxu0 0
  %177 = vmatpush1.bf16.msra.mxu0 0
  %178 = vmatprep.mubr.bf16.mxu0 0
  %179 = vmatmul.mubr.bf16.gmra.mrb[0].mxu0 %v84
  %v180 = vpop.f32.mrb[0].mxu0
  %v181 = vadd.f32 0.0, %v180
  %v182 = vpop.f32.mrb[0].mxu0
  %v183 = vadd.f32 0.0, %v182
  %v184 = vpop.f32.mrb[0].mxu0
  %v185 = vpop.f32.mrb[0].mxu0
  %186 = vdwg.mxu0
  %187 = vmatprep.subr.bf16.mxu0 %v103
  %188 = vmatpush1.bf16.msra.mxu0 %v100
  %189 = vmatprep.subr.bf16.mxu0 0
  %190 = vmatpush1.bf16.msra.mxu0 0
  %191 = vmatprep.subr.bf16.mxu0 0
  %192 = vmatpush1.bf16.msra.mxu0 0
  %193 = vmatprep.subr.bf16.mxu0 0
  %194 = vmatpush1.bf16.msra.mxu0 0
  %195 = vmatprep.subr.bf16.mxu0 0
  %196 = vmatpush1.bf16.msra.mxu0 0
  %197 = vmatprep.subr.bf16.mxu0 0
  %198 = vmatpush1.bf16.msra.mxu0 0
  %199 = vmatprep.subr.bf16.mxu0 0
  %200 = vmatpush1.bf16.msra.mxu0 0
  %201 = vmatprep.subr.bf16.mxu0 0
  %202 = vmatpush1.bf16.msra.mxu0 0
  %203 = vmatprep.subr.bf16.mxu0 0
  %204 = vmatpush1.bf16.msra.mxu0 0
  %205 = vmatprep.subr.bf16.mxu0 0
  %206 = vmatpush1.bf16.msra.mxu0 0
  %207 = vmatprep.subr.bf16.mxu0 0
  %208 = vmatpush1.bf16.msra.mxu0 0
  %209 = vmatprep.subr.bf16.mxu0 0
  %210 = vmatpush1.bf16.msra.mxu0 0
  %211 = vmatprep.subr.bf16.mxu0 0
  %212 = vmatpush1.bf16.msra.mxu0 0
  %213 = vmatprep.subr.bf16.mxu0 0
  %214 = vmatpush1.bf16.msra.mxu0 0
  %215 = vmatprep.subr.bf16.mxu0 0
  %216 = vmatpush1.bf16.msra.mxu0 0
  %217 = vmatprep.subr.bf16.mxu0 0
  %218 = vmatpush1.bf16.msra.mxu0 0
  %219 = vmatprep.mubr.bf16.mxu0 0
  %220 = vmatmul.mubr.bf16.gmra.mrb[0].mxu0 %v84
  %v221 = vpop.f32.mrb[0].mxu0
  %v222 = vadd.f32 0.0, %v221
  %v223 = vpop.f32.mrb[0].mxu0
  %v224 = vadd.f32 0.0, %v223
  %v225 = vpop.f32.mrb[0].mxu0
  %v226 = vpop.f32.mrb[0].mxu0
  %227 = vdwg.mxu0
  %v229 = vsel %vm82, %v23, 0
  %v232 = vsel %vm86, %v35, 0
  %v235 = vsel %vm86, %v43, 0
  %v238 = vsel %vm86, %v42, 0
  %v241 = vsel %vm86, %v44, 0
  %v244 = vsel %vm86, %v52, 0
  %v247 = vsel %vm86, %v60, 0
  %249 = vmatprep.subr.bf16.mxu0 %v235
  %250 = vmatpush1.bf16.msra.mxu0 %v232
  %251 = vmatprep.subr.bf16.mxu0 0
  %252 = vmatpush1.bf16.msra.mxu0 0
  %253 = vmatprep.subr.bf16.mxu0 0
  %254 = vmatpush1.bf16.msra.mxu0 0
  %255 = vmatprep.subr.bf16.mxu0 0
  %256 = vmatpush1.bf16.msra.mxu0 0
  %257 = vmatprep.subr.bf16.mxu0 0
  %258 = vmatpush1.bf16.msra.mxu0 0
  %259 = vmatprep.subr.bf16.mxu0 0
  %260 = vmatpush1.bf16.msra.mxu0 0
  %261 = vmatprep.subr.bf16.mxu0 0
  %262 = vmatpush1.bf16.msra.mxu0 0
  %263 = vmatprep.subr.bf16.mxu0 0
  %264 = vmatpush1.bf16.msra.mxu0 0
  %265 = vmatprep.subr.bf16.mxu0 0
  %266 = vmatpush1.bf16.msra.mxu0 0
  %267 = vmatprep.subr.bf16.mxu0 0
  %268 = vmatpush1.bf16.msra.mxu0 0
  %269 = vmatprep.subr.bf16.mxu0 0
  %270 = vmatpush1.bf16.msra.mxu0 0
  %271 = vmatprep.subr.bf16.mxu0 0
  %272 = vmatpush1.bf16.msra.mxu0 0
  %273 = vmatprep.subr.bf16.mxu0 0
  %274 = vmatpush1.bf16.msra.mxu0 0
  %275 = vmatprep.subr.bf16.mxu0 0
  %276 = vmatpush1.bf16.msra.mxu0 0
  %277 = vmatprep.subr.bf16.mxu0 0
  %278 = vmatpush1.bf16.msra.mxu0 0
  %279 = vmatprep.subr.bf16.mxu0 0
  %280 = vmatpush1.bf16.msra.mxu0 0
  %281 = vmatprep.mubr.bf16.mxu0 0
  %282 = vmatmul.mubr.bf16.gmra.mrb[0].mxu0 %v229
  %v283 = vpop.f32.mrb[0].mxu0
  %v284 = vadd.f32 %v140, %v283
  %v285 = vpop.f32.mrb[0].mxu0
  %v286 = vadd.f32 %v142, %v285
  %v287 = vpop.f32.mrb[0].mxu0
  %v288 = vpop.f32.mrb[0].mxu0
  %289 = vdwg.mxu0
  %290 = vmatprep.subr.bf16.mxu0 %v241
  %291 = vmatpush1.bf16.msra.mxu0 %v238
  %292 = vmatprep.subr.bf16.mxu0 0
  %293 = vmatpush1.bf16.msra.mxu0 0
  %294 = vmatprep.subr.bf16.mxu0 0
  %295 = vmatpush1.bf16.msra.mxu0 0
  %296 = vmatprep.subr.bf16.mxu0 0
  %297 = vmatpush1.bf16.msra.mxu0 0
  %298 = vmatprep.subr.bf16.mxu0 0
  %299 = vmatpush1.bf16.msra.mxu0 0
  %300 = vmatprep.subr.bf16.mxu0 0
  %301 = vmatpush1.bf16.msra.mxu0 0
  %302 = vmatprep.subr.bf16.mxu0 0
  %303 = vmatpush1.bf16.msra.mxu0 0
  %304 = vmatprep.subr.bf16.mxu0 0
  %305 = vmatpush1.bf16.msra.mxu0 0
  %306 = vmatprep.subr.bf16.mxu0 0
  %307 = vmatpush1.bf16.msra.mxu0 0
  %308 = vmatprep.subr.bf16.mxu0 0
  %309 = vmatpush1.bf16.msra.mxu0 0
  %310 = vmatprep.subr.bf16.mxu0 0
  %311 = vmatpush1.bf16.msra.mxu0 0
  %312 = vmatprep.subr.bf16.mxu0 0
  %313 = vmatpush1.bf16.msra.mxu0 0
  %314 = vmatprep.subr.bf16.mxu0 0
  %315 = vmatpush1.bf16.msra.mxu0 0
  %316 = vmatprep.subr.bf16.mxu0 0
  %317 = vmatpush1.bf16.msra.mxu0 0
  %318 = vmatprep.subr.bf16.mxu0 0
  %319 = vmatpush1.bf16.msra.mxu0 0
  %320 = vmatprep.subr.bf16.mxu0 0
  %321 = vmatpush1.bf16.msra.mxu0 0
  %322 = vmatprep.mubr.bf16.mxu0 0
  %323 = vmatmul.mubr.bf16.gmra.mrb[0].mxu0 %v229
  %v324 = vpop.f32.mrb[0].mxu0
  %v325 = vadd.f32 %v181, %v324
  %v326 = vpop.f32.mrb[0].mxu0
  %v327 = vadd.f32 %v183, %v326
  %v328 = vpop.f32.mrb[0].mxu0
  %v329 = vpop.f32.mrb[0].mxu0
  %330 = vdwg.mxu0
  %331 = vmatprep.subr.bf16.mxu0 %v247
  %332 = vmatpush1.bf16.msra.mxu0 %v244
  %333 = vmatprep.subr.bf16.mxu0 0
  %334 = vmatpush1.bf16.msra.mxu0 0
  %335 = vmatprep.subr.bf16.mxu0 0
  %336 = vmatpush1.bf16.msra.mxu0 0
  %337 = vmatprep.subr.bf16.mxu0 0
  %338 = vmatpush1.bf16.msra.mxu0 0
  %339 = vmatprep.subr.bf16.mxu0 0
  %340 = vmatpush1.bf16.msra.mxu0 0
  %341 = vmatprep.subr.bf16.mxu0 0
  %342 = vmatpush1.bf16.msra.mxu0 0
  %343 = vmatprep.subr.bf16.mxu0 0
  %344 = vmatpush1.bf16.msra.mxu0 0
  %345 = vmatprep.subr.bf16.mxu0 0
  %346 = vmatpush1.bf16.msra.mxu0 0
  %347 = vmatprep.subr.bf16.mxu0 0
  %348 = vmatpush1.bf16.msra.mxu0 0
  %349 = vmatprep.subr.bf16.mxu0 0
  %350 = vmatpush1.bf16.msra.mxu0 0
  %351 = vmatprep.subr.bf16.mxu0 0
  %352 = vmatpush1.bf16.msra.mxu0 0
  %353 = vmatprep.subr.bf16.mxu0 0
  %354 = vmatpush1.bf16.msra.mxu0 0
  %355 = vmatprep.subr.bf16.mxu0 0
  %356 = vmatpush1.bf16.msra.mxu0 0
  %357 = vmatprep.subr.bf16.mxu0 0
  %358 = vmatpush1.bf16.msra.mxu0 0
  %359 = vmatprep.subr.bf16.mxu0 0
  %360 = vmatpush1.bf16.msra.mxu0 0
  %361 = vmatprep.subr.bf16.mxu0 0
  %362 = vmatpush1.bf16.msra.mxu0 0
  %363 = vmatprep.mubr.bf16.mxu0 0
  %364 = vmatmul.mubr.bf16.gmra.mrb[0].mxu0 %v229
  %v365 = vpop.f32.mrb[0].mxu0
  %v366 = vadd.f32 %v222, %v365
  %v367 = vpop.f32.mrb[0].mxu0
  %v368 = vadd.f32 %v224, %v367
  %v369 = vpop.f32.mrb[0].mxu0
  %v370 = vpop.f32.mrb[0].mxu0
  %371 = vdwg.mxu0
  %s372 = scalar_lea.vmem %s1, 8
  %v373 = vld [vmem:[%s372] sm:$0xf]
  %374 = vrot.lane.b32.xlu0 %v35, 126
  %v375 = vpop.permute.xlu0 %374
  %376 = vrot.lane.b32.xlu0 %v43, 126
  %v377 = vpop.permute.xlu0 %376
  %378 = vrot.lane.b32.xlu0 %v42, 126
  %v379 = vpop.permute.xlu0 %378
  %380 = vrot.lane.b32.xlu0 %v44, 126
  %v381 = vpop.permute.xlu0 %380
  %382 = vrot.lane.b32.xlu0 %v52, 126
  %v383 = vpop.permute.xlu0 %382
  %384 = vrot.lane.b32.xlu0 %v60, 126
  %v385 = vpop.permute.xlu0 %384
  %386 = vrot.lane.b32.xlu0 %v59, 126
  %v387 = vpop.permute.xlu0 %386
  %vm388 = vcmask 1031168
  %v389 = vsel %vm388, %v375, %v377
  %v390 = vsel %vm388, %v377, %v379
  %v391 = vsel %vm388, %v379, %v381
  %v392 = vsel %vm388, %v381, %v383
  %v393 = vsel %vm388, %v383, %v385
  %v394 = vsel %vm388, %v385, %v387
  %v396 = vsel %vm82, %v373, 0
  %v399 = vsel %vm86, %v389, 0
  %v402 = vsel %vm86, %v390, 0
  %v405 = vsel %vm86, %v391, 0
  %v408 = vsel %vm86, %v392, 0
  %v411 = vsel %vm86, %v393, 0
  %v414 = vsel %vm86, %v394, 0
  %416 = vmatprep.subr.bf16.mxu0 %v402
  %417 = vmatpush1.bf16.msra.mxu0 %v399
  %418 = vmatprep.subr.bf16.mxu0 0
  %419 = vmatpush1.bf16.msra.mxu0 0
  %420 = vmatprep.subr.bf16.mxu0 0
  %421 = vmatpush1.bf16.msra.mxu0 0
  %422 = vmatprep.subr.bf16.mxu0 0
  %423 = vmatpush1.bf16.msra.mxu0 0
  %424 = vmatprep.subr.bf16.mxu0 0
  %425 = vmatpush1.bf16.msra.mxu0 0
  %426 = vmatprep.subr.bf16.mxu0 0
  %427 = vmatpush1.bf16.msra.mxu0 0
  %428 = vmatprep.subr.bf16.mxu0 0
  %429 = vmatpush1.bf16.msra.mxu0 0
  %430 = vmatprep.subr.bf16.mxu0 0
  %431 = vmatpush1.bf16.msra.mxu0 0
  %432 = vmatprep.subr.bf16.mxu0 0
  %433 = vmatpush1.bf16.msra.mxu0 0
  %434 = vmatprep.subr.bf16.mxu0 0
  %435 = vmatpush1.bf16.msra.mxu0 0
  %436 = vmatprep.subr.bf16.mxu0 0
  %437 = vmatpush1.bf16.msra.mxu0 0
  %438 = vmatprep.subr.bf16.mxu0 0
  %439 = vmatpush1.bf16.msra.mxu0 0
  %440 = vmatprep.subr.bf16.mxu0 0
  %441 = vmatpush1.bf16.msra.mxu0 0
  %442 = vmatprep.subr.bf16.mxu0 0
  %443 = vmatpush1.bf16.msra.mxu0 0
  %444 = vmatprep.subr.bf16.mxu0 0
  %445 = vmatpush1.bf16.msra.mxu0 0
  %446 = vmatprep.subr.bf16.mxu0 0
  %447 = vmatpush1.bf16.msra.mxu0 0
  %448 = vmatprep.mubr.bf16.mxu0 0
  %449 = vmatmul.mubr.bf16.gmra.mrb[0].mxu0 %v396
  %v450 = vpop.f32.mrb[0].mxu0
  %v451 = vadd.f32 0.0, %v450
  %v452 = vpop.f32.mrb[0].mxu0
  %v453 = vadd.f32 0.0, %v452
  %v454 = vpop.f32.mrb[0].mxu0
  %v455 = vpop.f32.mrb[0].mxu0
  %456 = vdwg.mxu0
  %457 = vmatprep.subr.bf16.mxu0 %v408
  %458 = vmatpush1.bf16.msra.mxu0 %v405
  %459 = vmatprep.subr.bf16.mxu0 0
  %460 = vmatpush1.bf16.msra.mxu0 0
  %461 = vmatprep.subr.bf16.mxu0 0
  %462 = vmatpush1.bf16.msra.mxu0 0
  %463 = vmatprep.subr.bf16.mxu0 0
  %464 = vmatpush1.bf16.msra.mxu0 0
  %465 = vmatprep.subr.bf16.mxu0 0
  %466 = vmatpush1.bf16.msra.mxu0 0
  %467 = vmatprep.subr.bf16.mxu0 0
  %468 = vmatpush1.bf16.msra.mxu0 0
  %469 = vmatprep.subr.bf16.mxu0 0
  %470 = vmatpush1.bf16.msra.mxu0 0
  %471 = vmatprep.subr.bf16.mxu0 0
  %472 = vmatpush1.bf16.msra.mxu0 0
  %473 = vmatprep.subr.bf16.mxu0 0
  %474 = vmatpush1.bf16.msra.mxu0 0
  %475 = vmatprep.subr.bf16.mxu0 0
  %476 = vmatpush1.bf16.msra.mxu0 0
  %477 = vmatprep.subr.bf16.mxu0 0
  %478 = vmatpush1.bf16.msra.mxu0 0
  %479 = vmatprep.subr.bf16.mxu0 0
  %480 = vmatpush1.bf16.msra.mxu0 0
  %481 = vmatprep.subr.bf16.mxu0 0
  %482 = vmatpush1.bf16.msra.mxu0 0
  %483 = vmatprep.subr.bf16.mxu0 0
  %484 = vmatpush1.bf16.msra.mxu0 0
  %485 = vmatprep.subr.bf16.mxu0 0
  %486 = vmatpush1.bf16.msra.mxu0 0
  %487 = vmatprep.subr.bf16.mxu0 0
  %488 = vmatpush1.bf16.msra.mxu0 0
  %489 = vmatprep.mubr.bf16.mxu0 0
  %490 = vmatmul.mubr.bf16.gmra.mrb[0].mxu0 %v396
  %v491 = vpop.f32.mrb[0].mxu0
  %v492 = vadd.f32 0.0, %v491
  %v493 = vpop.f32.mrb[0].mxu0
  %v494 = vadd.f32 0.0, %v493
  %v495 = vpop.f32.mrb[0].mxu0
  %v496 = vpop.f32.mrb[0].mxu0
  %497 = vdwg.mxu0
  %498 = vmatprep.subr.bf16.mxu0 %v414
  %499 = vmatpush1.bf16.msra.mxu0 %v411
  %500 = vmatprep.subr.bf16.mxu0 0
  %501 = vmatpush1.bf16.msra.mxu0 0
  %502 = vmatprep.subr.bf16.mxu0 0
  %503 = vmatpush1.bf16.msra.mxu0 0
  %504 = vmatprep.subr.bf16.mxu0 0
  %505 = vmatpush1.bf16.msra.mxu0 0
  %506 = vmatprep.subr.bf16.mxu0 0
  %507 = vmatpush1.bf16.msra.mxu0 0
  %508 = vmatprep.subr.bf16.mxu0 0
  %509 = vmatpush1.bf16.msra.mxu0 0
  %510 = vmatprep.subr.bf16.mxu0 0
  %511 = vmatpush1.bf16.msra.mxu0 0
  %512 = vmatprep.subr.bf16.mxu0 0
  %513 = vmatpush1.bf16.msra.mxu0 0
  %514 = vmatprep.subr.bf16.mxu0 0
  %515 = vmatpush1.bf16.msra.mxu0 0
  %516 = vmatprep.subr.bf16.mxu0 0
  %517 = vmatpush1.bf16.msra.mxu0 0
  %518 = vmatprep.subr.bf16.mxu0 0
  %519 = vmatpush1.bf16.msra.mxu0 0
  %520 = vmatprep.subr.bf16.mxu0 0
  %521 = vmatpush1.bf16.msra.mxu0 0
  %522 = vmatprep.subr.bf16.mxu0 0
  %523 = vmatpush1.bf16.msra.mxu0 0
  %524 = vmatprep.subr.bf16.mxu0 0
  %525 = vmatpush1.bf16.msra.mxu0 0
  %526 = vmatprep.subr.bf16.mxu0 0
  %527 = vmatpush1.bf16.msra.mxu0 0
  %528 = vmatprep.subr.bf16.mxu0 0
  %529 = vmatpush1.bf16.msra.mxu0 0
  %530 = vmatprep.mubr.bf16.mxu0 0
  %531 = vmatmul.mubr.bf16.gmra.mrb[0].mxu0 %v396
  %v532 = vpop.f32.mrb[0].mxu0
  %v533 = vadd.f32 0.0, %v532
  %v534 = vpop.f32.mrb[0].mxu0
  %v535 = vadd.f32 0.0, %v534
  %v536 = vpop.f32.mrb[0].mxu0
  %v537 = vpop.f32.mrb[0].mxu0
  %538 = vdwg.mxu0
  %v539 = vadd.f32 %v284, %v451
  %v540 = vadd.f32 %v286, %v453
  %v541 = vadd.f32 %v325, %v492
  %v542 = vadd.f32 %v327, %v494
  %v543 = vadd.f32 %v366, %v533
  %v544 = vadd.f32 %v368, %v535
  %s545 = scalar_lea.vmem %s1, 12
  %v546 = vld [vmem:[%s545] sm:$0xf]
  %547 = vrot.lane.b32.xlu0 %v35, 110
  %v548 = vpop.permute.xlu0 %547
  %549 = vrot.lane.b32.xlu0 %v43, 110
  %v550 = vpop.permute.xlu0 %549
  %551 = vrot.lane.b32.xlu0 %v42, 110
  %v552 = vpop.permute.xlu0 %551
  %553 = vrot.lane.b32.xlu0 %v44, 110
  %v554 = vpop.permute.xlu0 %553
  %555 = vrot.lane.b32.xlu0 %v52, 110
  %v556 = vpop.permute.xlu0 %555
  %557 = vrot.lane.b32.xlu0 %v60, 110
  %v558 = vpop.permute.xlu0 %557
  %559 = vrot.lane.b32.xlu0 %v59, 110
  %v560 = vpop.permute.xlu0 %559
  %vm561 = vcmask 900096
  %v562 = vsel %vm561, %v548, %v550
  %v563 = vsel %vm561, %v550, %v552
  %v564 = vsel %vm561, %v552, %v554
  %v565 = vsel %vm561, %v554, %v556
  %v566 = vsel %vm561, %v556, %v558
  %v567 = vsel %vm561, %v558, %v560
  %v569 = vsel %vm82, %v546, 0
  %v572 = vsel %vm86, %v562, 0
  %v575 = vsel %vm86, %v563, 0
  %v578 = vsel %vm86, %v564, 0
  %v581 = vsel %vm86, %v565, 0
  %v584 = vsel %vm86, %v566, 0
  %v587 = vsel %vm86, %v567, 0
  %589 = vmatprep.subr.bf16.mxu0 %v575
  %590 = vmatpush1.bf16.msra.mxu0 %v572
  %591 = vmatprep.subr.bf16.mxu0 0
  %592 = vmatpush1.bf16.msra.mxu0 0
  %593 = vmatprep.subr.bf16.mxu0 0
  %594 = vmatpush1.bf16.msra.mxu0 0
  %595 = vmatprep.subr.bf16.mxu0 0
  %596 = vmatpush1.bf16.msra.mxu0 0
  %597 = vmatprep.subr.bf16.mxu0 0
  %598 = vmatpush1.bf16.msra.mxu0 0
  %599 = vmatprep.subr.bf16.mxu0 0
  %600 = vmatpush1.bf16.msra.mxu0 0
  %601 = vmatprep.subr.bf16.mxu0 0
  %602 = vmatpush1.bf16.msra.mxu0 0
  %603 = vmatprep.subr.bf16.mxu0 0
  %604 = vmatpush1.bf16.msra.mxu0 0
  %605 = vmatprep.subr.bf16.mxu0 0
  %606 = vmatpush1.bf16.msra.mxu0 0
  %607 = vmatprep.subr.bf16.mxu0 0
  %608 = vmatpush1.bf16.msra.mxu0 0
  %609 = vmatprep.subr.bf16.mxu0 0
  %610 = vmatpush1.bf16.msra.mxu0 0
  %611 = vmatprep.subr.bf16.mxu0 0
  %612 = vmatpush1.bf16.msra.mxu0 0
  %613 = vmatprep.subr.bf16.mxu0 0
  %614 = vmatpush1.bf16.msra.mxu0 0
  %615 = vmatprep.subr.bf16.mxu0 0
  %616 = vmatpush1.bf16.msra.mxu0 0
  %617 = vmatprep.subr.bf16.mxu0 0
  %618 = vmatpush1.bf16.msra.mxu0 0
  %619 = vmatprep.subr.bf16.mxu0 0
  %620 = vmatpush1.bf16.msra.mxu0 0
  %621 = vmatprep.mubr.bf16.mxu0 0
  %622 = vmatmul.mubr.bf16.gmra.mrb[0].mxu0 %v569
  %v623 = vpop.f32.mrb[0].mxu0
  %v624 = vadd.f32 0.0, %v623
  %v625 = vpop.f32.mrb[0].mxu0
  %v626 = vadd.f32 0.0, %v625
  %v627 = vpop.f32.mrb[0].mxu0
  %v628 = vpop.f32.mrb[0].mxu0
  %629 = vdwg.mxu0
  %630 = vmatprep.subr.bf16.mxu0 %v581
  %631 = vmatpush1.bf16.msra.mxu0 %v578
  %632 = vmatprep.subr.bf16.mxu0 0
  %633 = vmatpush1.bf16.msra.mxu0 0
  %634 = vmatprep.subr.bf16.mxu0 0
  %635 = vmatpush1.bf16.msra.mxu0 0
  %636 = vmatprep.subr.bf16.mxu0 0
  %637 = vmatpush1.bf16.msra.mxu0 0
  %638 = vmatprep.subr.bf16.mxu0 0
  %639 = vmatpush1.bf16.msra.mxu0 0
  %640 = vmatprep.subr.bf16.mxu0 0
  %641 = vmatpush1.bf16.msra.mxu0 0
  %642 = vmatprep.subr.bf16.mxu0 0
  %643 = vmatpush1.bf16.msra.mxu0 0
  %644 = vmatprep.subr.bf16.mxu0 0
  %645 = vmatpush1.bf16.msra.mxu0 0
  %646 = vmatprep.subr.bf16.mxu0 0
  %647 = vmatpush1.bf16.msra.mxu0 0
  %648 = vmatprep.subr.bf16.mxu0 0
  %649 = vmatpush1.bf16.msra.mxu0 0
  %650 = vmatprep.subr.bf16.mxu0 0
  %651 = vmatpush1.bf16.msra.mxu0 0
  %652 = vmatprep.subr.bf16.mxu0 0
  %653 = vmatpush1.bf16.msra.mxu0 0
  %654 = vmatprep.subr.bf16.mxu0 0
  %655 = vmatpush1.bf16.msra.mxu0 0
  %656 = vmatprep.subr.bf16.mxu0 0
  %657 = vmatpush1.bf16.msra.mxu0 0
  %658 = vmatprep.subr.bf16.mxu0 0
  %659 = vmatpush1.bf16.msra.mxu0 0
  %660 = vmatprep.subr.bf16.mxu0 0
  %661 = vmatpush1.bf16.msra.mxu0 0
  %662 = vmatprep.mubr.bf16.mxu0 0
  %663 = vmatmul.mubr.bf16.gmra.mrb[0].mxu0 %v569
  %v664 = vpop.f32.mrb[0].mxu0
  %v665 = vadd.f32 0.0, %v664
  %v666 = vpop.f32.mrb[0].mxu0
  %v667 = vadd.f32 0.0, %v666
  %v668 = vpop.f32.mrb[0].mxu0
  %v669 = vpop.f32.mrb[0].mxu0
  %670 = vdwg.mxu0
  %671 = vmatprep.subr.bf16.mxu0 %v587
  %672 = vmatpush1.bf16.msra.mxu0 %v584
  %673 = vmatprep.subr.bf16.mxu0 0
  %674 = vmatpush1.bf16.msra.mxu0 0
  %675 = vmatprep.subr.bf16.mxu0 0
  %676 = vmatpush1.bf16.msra.mxu0 0
  %677 = vmatprep.subr.bf16.mxu0 0
  %678 = vmatpush1.bf16.msra.mxu0 0
  %679 = vmatprep.subr.bf16.mxu0 0
  %680 = vmatpush1.bf16.msra.mxu0 0
  %681 = vmatprep.subr.bf16.mxu0 0
  %682 = vmatpush1.bf16.msra.mxu0 0
  %683 = vmatprep.subr.bf16.mxu0 0
  %684 = vmatpush1.bf16.msra.mxu0 0
  %685 = vmatprep.subr.bf16.mxu0 0
  %686 = vmatpush1.bf16.msra.mxu0 0
  %687 = vmatprep.subr.bf16.mxu0 0
  %688 = vmatpush1.bf16.msra.mxu0 0
  %689 = vmatprep.subr.bf16.mxu0 0
  %690 = vmatpush1.bf16.msra.mxu0 0
  %691 = vmatprep.subr.bf16.mxu0 0
  %692 = vmatpush1.bf16.msra.mxu0 0
  %693 = vmatprep.subr.bf16.mxu0 0
  %694 = vmatpush1.bf16.msra.mxu0 0
  %695 = vmatprep.subr.bf16.mxu0 0
  %696 = vmatpush1.bf16.msra.mxu0 0
  %697 = vmatprep.subr.bf16.mxu0 0
  %698 = vmatpush1.bf16.msra.mxu0 0
  %699 = vmatprep.subr.bf16.mxu0 0
  %700 = vmatpush1.bf16.msra.mxu0 0
  %701 = vmatprep.subr.bf16.mxu0 0
  %702 = vmatpush1.bf16.msra.mxu0 0
  %703 = vmatprep.mubr.bf16.mxu0 0
  %704 = vmatmul.mubr.bf16.gmra.mrb[0].mxu0 %v569
  %v705 = vpop.f32.mrb[0].mxu0
  %v706 = vadd.f32 0.0, %v705
  %v707 = vpop.f32.mrb[0].mxu0
  %v708 = vadd.f32 0.0, %v707
  %v709 = vpop.f32.mrb[0].mxu0
  %v710 = vpop.f32.mrb[0].mxu0
  %711 = vdwg.mxu0
  %v712 = vadd.f32 %v539, %v624
  %v713 = vadd.f32 %v540, %v626
  %v714 = vadd.f32 %v541, %v665
  %v715 = vadd.f32 %v542, %v667
  %v716 = vadd.f32 %v543, %v706
  %v717 = vadd.f32 %v544, %v708
  %s718 = scalar_lea.vmem %s1, 16
  %v719 = vld [vmem:[%s718] sm:$0xf]
  %720 = vrot.lane.b32.xlu0 %v35, 109
  %v721 = vpop.permute.xlu0 %720
  %722 = vrot.lane.b32.xlu0 %v43, 109
  %v723 = vpop.permute.xlu0 %722
  %724 = vrot.lane.b32.xlu0 %v42, 109
  %v725 = vpop.permute.xlu0 %724
  %726 = vrot.lane.b32.xlu0 %v44, 109
  %v727 = vpop.permute.xlu0 %726
  %728 = vrot.lane.b32.xlu0 %v52, 109
  %v729 = vpop.permute.xlu0 %728
  %730 = vrot.lane.b32.xlu0 %v60, 109
  %v731 = vpop.permute.xlu0 %730
  %732 = vrot.lane.b32.xlu0 %v59, 109
  %v733 = vpop.permute.xlu0 %732
  %vm734 = vcmask 891904
  %v735 = vsel %vm734, %v721, %v723
  %v736 = vsel %vm734, %v723, %v725
  %v737 = vsel %vm734, %v725, %v727
  %v738 = vsel %vm734, %v727, %v729
  %v739 = vsel %vm734, %v729, %v731
  %v740 = vsel %vm734, %v731, %v733
  %v742 = vsel %vm82, %v719, 0
  %v745 = vsel %vm86, %v735, 0
  %v748 = vsel %vm86, %v736, 0
  %v751 = vsel %vm86, %v737, 0
  %v754 = vsel %vm86, %v738, 0
  %v757 = vsel %vm86, %v739, 0
  %v760 = vsel %vm86, %v740, 0
  %762 = vmatprep.subr.bf16.mxu0 %v748
  %763 = vmatpush1.bf16.msra.mxu0 %v745
  %764 = vmatprep.subr.bf16.mxu0 0
  %765 = vmatpush1.bf16.msra.mxu0 0
  %766 = vmatprep.subr.bf16.mxu0 0
  %767 = vmatpush1.bf16.msra.mxu0 0
  %768 = vmatprep.subr.bf16.mxu0 0
  %769 = vmatpush1.bf16.msra.mxu0 0
  %770 = vmatprep.subr.bf16.mxu0 0
  %771 = vmatpush1.bf16.msra.mxu0 0
  %772 = vmatprep.subr.bf16.mxu0 0
  %773 = vmatpush1.bf16.msra.mxu0 0
  %774 = vmatprep.subr.bf16.mxu0 0
  %775 = vmatpush1.bf16.msra.mxu0 0
  %776 = vmatprep.subr.bf16.mxu0 0
  %777 = vmatpush1.bf16.msra.mxu0 0
  %778 = vmatprep.subr.bf16.mxu0 0
  %779 = vmatpush1.bf16.msra.mxu0 0
  %780 = vmatprep.subr.bf16.mxu0 0
  %781 = vmatpush1.bf16.msra.mxu0 0
  %782 = vmatprep.subr.bf16.mxu0 0
  %783 = vmatpush1.bf16.msra.mxu0 0
  %784 = vmatprep.subr.bf16.mxu0 0
  %785 = vmatpush1.bf16.msra.mxu0 0
  %786 = vmatprep.subr.bf16.mxu0 0
  %787 = vmatpush1.bf16.msra.mxu0 0
  %788 = vmatprep.subr.bf16.mxu0 0
  %789 = vmatpush1.bf16.msra.mxu0 0
  %790 = vmatprep.subr.bf16.mxu0 0
  %791 = vmatpush1.bf16.msra.mxu0 0
  %792 = vmatprep.subr.bf16.mxu0 0
  %793 = vmatpush1.bf16.msra.mxu0 0
  %794 = vmatprep.mubr.bf16.mxu0 0
  %795 = vmatmul.mubr.bf16.gmra.mrb[0].mxu0 %v742
  %v796 = vpop.f32.mrb[0].mxu0
  %v797 = vadd.f32 0.0, %v796
  %v798 = vpop.f32.mrb[0].mxu0
  %v799 = vadd.f32 0.0, %v798
  %v800 = vpop.f32.mrb[0].mxu0
  %v801 = vpop.f32.mrb[0].mxu0
  %802 = vdwg.mxu0
  %803 = vmatprep.subr.bf16.mxu0 %v754
  %804 = vmatpush1.bf16.msra.mxu0 %v751
  %805 = vmatprep.subr.bf16.mxu0 0
  %806 = vmatpush1.bf16.msra.mxu0 0
  %807 = vmatprep.subr.bf16.mxu0 0
  %808 = vmatpush1.bf16.msra.mxu0 0
  %809 = vmatprep.subr.bf16.mxu0 0
  %810 = vmatpush1.bf16.msra.mxu0 0
  %811 = vmatprep.subr.bf16.mxu0 0
  %812 = vmatpush1.bf16.msra.mxu0 0
  %813 = vmatprep.subr.bf16.mxu0 0
  %814 = vmatpush1.bf16.msra.mxu0 0
  %815 = vmatprep.subr.bf16.mxu0 0
  %816 = vmatpush1.bf16.msra.mxu0 0
  %817 = vmatprep.subr.bf16.mxu0 0
  %818 = vmatpush1.bf16.msra.mxu0 0
  %819 = vmatprep.subr.bf16.mxu0 0
  %820 = vmatpush1.bf16.msra.mxu0 0
  %821 = vmatprep.subr.bf16.mxu0 0
  %822 = vmatpush1.bf16.msra.mxu0 0
  %823 = vmatprep.subr.bf16.mxu0 0
  %824 = vmatpush1.bf16.msra.mxu0 0
  %825 = vmatprep.subr.bf16.mxu0 0
  %826 = vmatpush1.bf16.msra.mxu0 0
  %827 = vmatprep.subr.bf16.mxu0 0
  %828 = vmatpush1.bf16.msra.mxu0 0
  %829 = vmatprep.subr.bf16.mxu0 0
  %830 = vmatpush1.bf16.msra.mxu0 0
  %831 = vmatprep.subr.bf16.mxu0 0
  %832 = vmatpush1.bf16.msra.mxu0 0
  %833 = vmatprep.subr.bf16.mxu0 0
  %834 = vmatpush1.bf16.msra.mxu0 0
  %835 = vmatprep.mubr.bf16.mxu0 0
  %836 = vmatmul.mubr.bf16.gmra.mrb[0].mxu0 %v742
  %v837 = vpop.f32.mrb[0].mxu0
  %v838 = vadd.f32 0.0, %v837
  %v839 = vpop.f32.mrb[0].mxu0
  %v840 = vadd.f32 0.0, %v839
  %v841 = vpop.f32.mrb[0].mxu0
  %v842 = vpop.f32.mrb[0].mxu0
  %843 = vdwg.mxu0
  %844 = vmatprep.subr.bf16.mxu0 %v760
  %845 = vmatpush1.bf16.msra.mxu0 %v757
  %846 = vmatprep.subr.bf16.mxu0 0
  %847 = vmatpush1.bf16.msra.mxu0 0
  %848 = vmatprep.subr.bf16.mxu0 0
  %849 = vmatpush1.bf16.msra.mxu0 0
  %850 = vmatprep.subr.bf16.mxu0 0
  %851 = vmatpush1.bf16.msra.mxu0 0
  %852 = vmatprep.subr.bf16.mxu0 0
  %853 = vmatpush1.bf16.msra.mxu0 0
  %854 = vmatprep.subr.bf16.mxu0 0
  %855 = vmatpush1.bf16.msra.mxu0 0
  %856 = vmatprep.subr.bf16.mxu0 0
  %857 = vmatpush1.bf16.msra.mxu0 0
  %858 = vmatprep.subr.bf16.mxu0 0
  %859 = vmatpush1.bf16.msra.mxu0 0
  %860 = vmatprep.subr.bf16.mxu0 0
  %861 = vmatpush1.bf16.msra.mxu0 0
  %862 = vmatprep.subr.bf16.mxu0 0
  %863 = vmatpush1.bf16.msra.mxu0 0
  %864 = vmatprep.subr.bf16.mxu0 0
  %865 = vmatpush1.bf16.msra.mxu0 0
  %866 = vmatprep.subr.bf16.mxu0 0
  %867 = vmatpush1.bf16.msra.mxu0 0
  %868 = vmatprep.subr.bf16.mxu0 0
  %869 = vmatpush1.bf16.msra.mxu0 0
  %870 = vmatprep.subr.bf16.mxu0 0
  %871 = vmatpush1.bf16.msra.mxu0 0
  %872 = vmatprep.subr.bf16.mxu0 0
  %873 = vmatpush1.bf16.msra.mxu0 0
  %874 = vmatprep.subr.bf16.mxu0 0
  %875 = vmatpush1.bf16.msra.mxu0 0
  %876 = vmatprep.mubr.bf16.mxu0 0
  %877 = vmatmul.mubr.bf16.gmra.mrb[0].mxu0 %v742
  %v878 = vpop.f32.mrb[0].mxu0
  %v879 = vadd.f32 0.0, %v878
  %v880 = vpop.f32.mrb[0].mxu0
  %v881 = vadd.f32 0.0, %v880
  %v882 = vpop.f32.mrb[0].mxu0
  %v883 = vpop.f32.mrb[0].mxu0
  %884 = vdwg.mxu0
  %v885 = vadd.f32 %v712, %v797
  %v886 = vadd.f32 %v713, %v799
  %v887 = vadd.f32 %v714, %v838
  %v888 = vadd.f32 %v715, %v840
  %v889 = vadd.f32 %v716, %v879
  %v890 = vadd.f32 %v717, %v881
  %s891 = scalar_lea.vmem %s1, 20
  %v892 = vld [vmem:[%s891] sm:$0xf]
  %893 = vrot.lane.b32.xlu0 %v35, 108
  %v894 = vpop.permute.xlu0 %893
  %895 = vrot.lane.b32.xlu0 %v43, 108
  %v896 = vpop.permute.xlu0 %895
  %897 = vrot.lane.b32.xlu0 %v42, 108
  %v898 = vpop.permute.xlu0 %897
  %899 = vrot.lane.b32.xlu0 %v44, 108
  %v900 = vpop.permute.xlu0 %899
  %901 = vrot.lane.b32.xlu0 %v52, 108
  %v902 = vpop.permute.xlu0 %901
  %903 = vrot.lane.b32.xlu0 %v60, 108
  %v904 = vpop.permute.xlu0 %903
  %905 = vrot.lane.b32.xlu0 %v59, 108
  %v906 = vpop.permute.xlu0 %905
  %vm907 = vcmask 883712
  %v908 = vsel %vm907, %v894, %v896
  %v909 = vsel %vm907, %v896, %v898
  %v910 = vsel %vm907, %v898, %v900
  %v911 = vsel %vm907, %v900, %v902
  %v912 = vsel %vm907, %v902, %v904
  %v913 = vsel %vm907, %v904, %v906
  %v915 = vsel %vm82, %v892, 0
  %v918 = vsel %vm86, %v908, 0
  %v921 = vsel %vm86, %v909, 0
  %v924 = vsel %vm86, %v910, 0
  %v927 = vsel %vm86, %v911, 0
  %v930 = vsel %vm86, %v912, 0
  %v933 = vsel %vm86, %v913, 0
  %935 = vmatprep.subr.bf16.mxu0 %v921
  %936 = vmatpush1.bf16.msra.mxu0 %v918
  %937 = vmatprep.subr.bf16.mxu0 0
  %938 = vmatpush1.bf16.msra.mxu0 0
  %939 = vmatprep.subr.bf16.mxu0 0
  %940 = vmatpush1.bf16.msra.mxu0 0
  %941 = vmatprep.subr.bf16.mxu0 0
  %942 = vmatpush1.bf16.msra.mxu0 0
  %943 = vmatprep.subr.bf16.mxu0 0
  %944 = vmatpush1.bf16.msra.mxu0 0
  %945 = vmatprep.subr.bf16.mxu0 0
  %946 = vmatpush1.bf16.msra.mxu0 0
  %947 = vmatprep.subr.bf16.mxu0 0
  %948 = vmatpush1.bf16.msra.mxu0 0
  %949 = vmatprep.subr.bf16.mxu0 0
  %950 = vmatpush1.bf16.msra.mxu0 0
  %951 = vmatprep.subr.bf16.mxu0 0
  %952 = vmatpush1.bf16.msra.mxu0 0
  %953 = vmatprep.subr.bf16.mxu0 0
  %954 = vmatpush1.bf16.msra.mxu0 0
  %955 = vmatprep.subr.bf16.mxu0 0
  %956 = vmatpush1.bf16.msra.mxu0 0
  %957 = vmatprep.subr.bf16.mxu0 0
  %958 = vmatpush1.bf16.msra.mxu0 0
  %959 = vmatprep.subr.bf16.mxu0 0
  %960 = vmatpush1.bf16.msra.mxu0 0
  %961 = vmatprep.subr.bf16.mxu0 0
  %962 = vmatpush1.bf16.msra.mxu0 0
  %963 = vmatprep.subr.bf16.mxu0 0
  %964 = vmatpush1.bf16.msra.mxu0 0
  %965 = vmatprep.subr.bf16.mxu0 0
  %966 = vmatpush1.bf16.msra.mxu0 0
  %967 = vmatprep.mubr.bf16.mxu0 0
  %968 = vmatmul.mubr.bf16.gmra.mrb[0].mxu0 %v915
  %v969 = vpop.f32.mrb[0].mxu0
  %v970 = vadd.f32 0.0, %v969
  %v971 = vpop.f32.mrb[0].mxu0
  %v972 = vadd.f32 0.0, %v971
  %v973 = vpop.f32.mrb[0].mxu0
  %v974 = vpop.f32.mrb[0].mxu0
  %975 = vdwg.mxu0
  %976 = vmatprep.subr.bf16.mxu0 %v927
  %977 = vmatpush1.bf16.msra.mxu0 %v924
  %978 = vmatprep.subr.bf16.mxu0 0
  %979 = vmatpush1.bf16.msra.mxu0 0
  %980 = vmatprep.subr.bf16.mxu0 0
  %981 = vmatpush1.bf16.msra.mxu0 0
  %982 = vmatprep.subr.bf16.mxu0 0
  %983 = vmatpush1.bf16.msra.mxu0 0
  %984 = vmatprep.subr.bf16.mxu0 0
  %985 = vmatpush1.bf16.msra.mxu0 0
  %986 = vmatprep.subr.bf16.mxu0 0
  %987 = vmatpush1.bf16.msra.mxu0 0
  %988 = vmatprep.subr.bf16.mxu0 0
  %989 = vmatpush1.bf16.msra.mxu0 0
  %990 = vmatprep.subr.bf16.mxu0 0
  %991 = vmatpush1.bf16.msra.mxu0 0
  %992 = vmatprep.subr.bf16.mxu0 0
  %993 = vmatpush1.bf16.msra.mxu0 0
  %994 = vmatprep.subr.bf16.mxu0 0
  %995 = vmatpush1.bf16.msra.mxu0 0
  %996 = vmatprep.subr.bf16.mxu0 0
  %997 = vmatpush1.bf16.msra.mxu0 0
  %998 = vmatprep.subr.bf16.mxu0 0
  %999 = vmatpush1.bf16.msra.mxu0 0
  %1000 = vmatprep.subr.bf16.mxu0 0
  %1001 = vmatpush1.bf16.msra.mxu0 0
  %1002 = vmatprep.subr.bf16.mxu0 0
  %1003 = vmatpush1.bf16.msra.mxu0 0
  %1004 = vmatprep.subr.bf16.mxu0 0
  %1005 = vmatpush1.bf16.msra.mxu0 0
  %1006 = vmatprep.subr.bf16.mxu0 0
  %1007 = vmatpush1.bf16.msra.mxu0 0
  %1008 = vmatprep.mubr.bf16.mxu0 0
  %1009 = vmatmul.mubr.bf16.gmra.mrb[0].mxu0 %v915
  %v1010 = vpop.f32.mrb[0].mxu0
  %v1011 = vadd.f32 0.0, %v1010
  %v1012 = vpop.f32.mrb[0].mxu0
  %v1013 = vadd.f32 0.0, %v1012
  %v1014 = vpop.f32.mrb[0].mxu0
  %v1015 = vpop.f32.mrb[0].mxu0
  %1016 = vdwg.mxu0
  %1017 = vmatprep.subr.bf16.mxu0 %v933
  %1018 = vmatpush1.bf16.msra.mxu0 %v930
  %1019 = vmatprep.subr.bf16.mxu0 0
  %1020 = vmatpush1.bf16.msra.mxu0 0
  %1021 = vmatprep.subr.bf16.mxu0 0
  %1022 = vmatpush1.bf16.msra.mxu0 0
  %1023 = vmatprep.subr.bf16.mxu0 0
  %1024 = vmatpush1.bf16.msra.mxu0 0
  %1025 = vmatprep.subr.bf16.mxu0 0
  %1026 = vmatpush1.bf16.msra.mxu0 0
  %1027 = vmatprep.subr.bf16.mxu0 0
  %1028 = vmatpush1.bf16.msra.mxu0 0
  %1029 = vmatprep.subr.bf16.mxu0 0
  %1030 = vmatpush1.bf16.msra.mxu0 0
  %1031 = vmatprep.subr.bf16.mxu0 0
  %1032 = vmatpush1.bf16.msra.mxu0 0
  %1033 = vmatprep.subr.bf16.mxu0 0
  %1034 = vmatpush1.bf16.msra.mxu0 0
  %1035 = vmatprep.subr.bf16.mxu0 0
  %1036 = vmatpush1.bf16.msra.mxu0 0
  %1037 = vmatprep.subr.bf16.mxu0 0
  %1038 = vmatpush1.bf16.msra.mxu0 0
  %1039 = vmatprep.subr.bf16.mxu0 0
  %1040 = vmatpush1.bf16.msra.mxu0 0
  %1041 = vmatprep.subr.bf16.mxu0 0
  %1042 = vmatpush1.bf16.msra.mxu0 0
  %1043 = vmatprep.subr.bf16.mxu0 0
  %1044 = vmatpush1.bf16.msra.mxu0 0
  %1045 = vmatprep.subr.bf16.mxu0 0
  %1046 = vmatpush1.bf16.msra.mxu0 0
  %1047 = vmatprep.subr.bf16.mxu0 0
  %1048 = vmatpush1.bf16.msra.mxu0 0
  %1049 = vmatprep.mubr.bf16.mxu0 0
  %1050 = vmatmul.mubr.bf16.gmra.mrb[0].mxu0 %v915
  %v1051 = vpop.f32.mrb[0].mxu0
  %v1052 = vadd.f32 0.0, %v1051
  %v1053 = vpop.f32.mrb[0].mxu0
  %v1054 = vadd.f32 0.0, %v1053
  %v1055 = vpop.f32.mrb[0].mxu0
  %v1056 = vpop.f32.mrb[0].mxu0
  %1057 = vdwg.mxu0
  %v1058 = vadd.f32 %v885, %v970
  %v1059 = vadd.f32 %v886, %v972
  %v1060 = vadd.f32 %v887, %v1011
  %v1061 = vadd.f32 %v888, %v1013
  %v1062 = vadd.f32 %v889, %v1052
  %v1063 = vadd.f32 %v890, %v1054
  %s1064 = scalar_lea.vmem %s1, 24
  %v1065 = vld [vmem:[%s1064] sm:$0xf]
  %1066 = vrot.lane.b32.xlu0 %v35, 92
  %v1067 = vpop.permute.xlu0 %1066
  %1068 = vrot.lane.b32.xlu0 %v43, 92
  %v1069 = vpop.permute.xlu0 %1068
  %1070 = vrot.lane.b32.xlu0 %v42, 92
  %v1071 = vpop.permute.xlu0 %1070
  %1072 = vrot.lane.b32.xlu0 %v44, 92
  %v1073 = vpop.permute.xlu0 %1072
  %1074 = vrot.lane.b32.xlu0 %v52, 92
  %v1075 = vpop.permute.xlu0 %1074
  %1076 = vrot.lane.b32.xlu0 %v60, 92
  %v1077 = vpop.permute.xlu0 %1076
  %1078 = vrot.lane.b32.xlu0 %v59, 92
  %v1079 = vpop.permute.xlu0 %1078
  %vm1080 = vcmask 752640
  %v1081 = vsel %vm1080, %v1067, %v1069
  %v1082 = vsel %vm1080, %v1069, %v1071
  %v1083 = vsel %vm1080, %v1071, %v1073
  %v1084 = vsel %vm1080, %v1073, %v1075
  %v1085 = vsel %vm1080, %v1075, %v1077
  %v1086 = vsel %vm1080, %v1077, %v1079
  %v1088 = vsel %vm82, %v1065, 0
  %v1091 = vsel %vm86, %v1081, 0
  %v1094 = vsel %vm86, %v1082, 0
  %v1097 = vsel %vm86, %v1083, 0
  %v1100 = vsel %vm86, %v1084, 0
  %v1103 = vsel %vm86, %v1085, 0
  %v1106 = vsel %vm86, %v1086, 0
  %1108 = vmatprep.subr.bf16.mxu0 %v1094
  %1109 = vmatpush1.bf16.msra.mxu0 %v1091
  %1110 = vmatprep.subr.bf16.mxu0 0
  %1111 = vmatpush1.bf16.msra.mxu0 0
  %1112 = vmatprep.subr.bf16.mxu0 0
  %1113 = vmatpush1.bf16.msra.mxu0 0
  %1114 = vmatprep.subr.bf16.mxu0 0
  %1115 = vmatpush1.bf16.msra.mxu0 0
  %1116 = vmatprep.subr.bf16.mxu0 0
  %1117 = vmatpush1.bf16.msra.mxu0 0
  %1118 = vmatprep.subr.bf16.mxu0 0
  %1119 = vmatpush1.bf16.msra.mxu0 0
  %1120 = vmatprep.subr.bf16.mxu0 0
  %1121 = vmatpush1.bf16.msra.mxu0 0
  %1122 = vmatprep.subr.bf16.mxu0 0
  %1123 = vmatpush1.bf16.msra.mxu0 0
  %1124 = vmatprep.subr.bf16.mxu0 0
  %1125 = vmatpush1.bf16.msra.mxu0 0
  %1126 = vmatprep.subr.bf16.mxu0 0
  %1127 = vmatpush1.bf16.msra.mxu0 0
  %1128 = vmatprep.subr.bf16.mxu0 0
  %1129 = vmatpush1.bf16.msra.mxu0 0
  %1130 = vmatprep.subr.bf16.mxu0 0
  %1131 = vmatpush1.bf16.msra.mxu0 0
  %1132 = vmatprep.subr.bf16.mxu0 0
  %1133 = vmatpush1.bf16.msra.mxu0 0
  %1134 = vmatprep.subr.bf16.mxu0 0
  %1135 = vmatpush1.bf16.msra.mxu0 0
  %1136 = vmatprep.subr.bf16.mxu0 0
  %1137 = vmatpush1.bf16.msra.mxu0 0
  %1138 = vmatprep.subr.bf16.mxu0 0
  %1139 = vmatpush1.bf16.msra.mxu0 0
  %1140 = vmatprep.mubr.bf16.mxu0 0
  %1141 = vmatmul.mubr.bf16.gmra.mrb[0].mxu0 %v1088
  %v1142 = vpop.f32.mrb[0].mxu0
  %v1143 = vadd.f32 0.0, %v1142
  %v1144 = vpop.f32.mrb[0].mxu0
  %v1145 = vadd.f32 0.0, %v1144
  %v1146 = vpop.f32.mrb[0].mxu0
  %v1147 = vpop.f32.mrb[0].mxu0
  %1148 = vdwg.mxu0
  %1149 = vmatprep.subr.bf16.mxu0 %v1100
  %1150 = vmatpush1.bf16.msra.mxu0 %v1097
  %1151 = vmatprep.subr.bf16.mxu0 0
  %1152 = vmatpush1.bf16.msra.mxu0 0
  %1153 = vmatprep.subr.bf16.mxu0 0
  %1154 = vmatpush1.bf16.msra.mxu0 0
  %1155 = vmatprep.subr.bf16.mxu0 0
  %1156 = vmatpush1.bf16.msra.mxu0 0
  %1157 = vmatprep.subr.bf16.mxu0 0
  %1158 = vmatpush1.bf16.msra.mxu0 0
  %1159 = vmatprep.subr.bf16.mxu0 0
  %1160 = vmatpush1.bf16.msra.mxu0 0
  %1161 = vmatprep.subr.bf16.mxu0 0
  %1162 = vmatpush1.bf16.msra.mxu0 0
  %1163 = vmatprep.subr.bf16.mxu0 0
  %1164 = vmatpush1.bf16.msra.mxu0 0
  %1165 = vmatprep.subr.bf16.mxu0 0
  %1166 = vmatpush1.bf16.msra.mxu0 0
  %1167 = vmatprep.subr.bf16.mxu0 0
  %1168 = vmatpush1.bf16.msra.mxu0 0
  %1169 = vmatprep.subr.bf16.mxu0 0
  %1170 = vmatpush1.bf16.msra.mxu0 0
  %1171 = vmatprep.subr.bf16.mxu0 0
  %1172 = vmatpush1.bf16.msra.mxu0 0
  %1173 = vmatprep.subr.bf16.mxu0 0
  %1174 = vmatpush1.bf16.msra.mxu0 0
  %1175 = vmatprep.subr.bf16.mxu0 0
  %1176 = vmatpush1.bf16.msra.mxu0 0
  %1177 = vmatprep.subr.bf16.mxu0 0
  %1178 = vmatpush1.bf16.msra.mxu0 0
  %1179 = vmatprep.subr.bf16.mxu0 0
  %1180 = vmatpush1.bf16.msra.mxu0 0
  %1181 = vmatprep.mubr.bf16.mxu0 0
  %1182 = vmatmul.mubr.bf16.gmra.mrb[0].mxu0 %v1088
  %v1183 = vpop.f32.mrb[0].mxu0
  %v1184 = vadd.f32 0.0, %v1183
  %v1185 = vpop.f32.mrb[0].mxu0
  %v1186 = vadd.f32 0.0, %v1185
  %v1187 = vpop.f32.mrb[0].mxu0
  %v1188 = vpop.f32.mrb[0].mxu0
  %1189 = vdwg.mxu0
  %1190 = vmatprep.subr.bf16.mxu0 %v1106
  %1191 = vmatpush1.bf16.msra.mxu0 %v1103
  %1192 = vmatprep.subr.bf16.mxu0 0
  %1193 = vmatpush1.bf16.msra.mxu0 0
  %1194 = vmatprep.subr.bf16.mxu0 0
  %1195 = vmatpush1.bf16.msra.mxu0 0
  %1196 = vmatprep.subr.bf16.mxu0 0
  %1197 = vmatpush1.bf16.msra.mxu0 0
  %1198 = vmatprep.subr.bf16.mxu0 0
  %1199 = vmatpush1.bf16.msra.mxu0 0
  %1200 = vmatprep.subr.bf16.mxu0 0
  %1201 = vmatpush1.bf16.msra.mxu0 0
  %1202 = vmatprep.subr.bf16.mxu0 0
  %1203 = vmatpush1.bf16.msra.mxu0 0
  %1204 = vmatprep.subr.bf16.mxu0 0
  %1205 = vmatpush1.bf16.msra.mxu0 0
  %1206 = vmatprep.subr.bf16.mxu0 0
  %1207 = vmatpush1.bf16.msra.mxu0 0
  %1208 = vmatprep.subr.bf16.mxu0 0
  %1209 = vmatpush1.bf16.msra.mxu0 0
  %1210 = vmatprep.subr.bf16.mxu0 0
  %1211 = vmatpush1.bf16.msra.mxu0 0
  %1212 = vmatprep.subr.bf16.mxu0 0
  %1213 = vmatpush1.bf16.msra.mxu0 0
  %1214 = vmatprep.subr.bf16.mxu0 0
  %1215 = vmatpush1.bf16.msra.mxu0 0
  %1216 = vmatprep.subr.bf16.mxu0 0
  %1217 = vmatpush1.bf16.msra.mxu0 0
  %1218 = vmatprep.subr.bf16.mxu0 0
  %1219 = vmatpush1.bf16.msra.mxu0 0
  %1220 = vmatprep.subr.bf16.mxu0 0
  %1221 = vmatpush1.bf16.msra.mxu0 0
  %1222 = vmatprep.mubr.bf16.mxu0 0
  %1223 = vmatmul.mubr.bf16.gmra.mrb[0].mxu0 %v1088
  %v1224 = vpop.f32.mrb[0].mxu0
  %v1225 = vadd.f32 0.0, %v1224
  %v1226 = vpop.f32.mrb[0].mxu0
  %v1227 = vadd.f32 0.0, %v1226
  %v1228 = vpop.f32.mrb[0].mxu0
  %v1229 = vpop.f32.mrb[0].mxu0
  %1230 = vdwg.mxu0
  %v1231 = vadd.f32 %v1058, %v1143
  %v1232 = vadd.f32 %v1059, %v1145
  %v1233 = vadd.f32 %v1060, %v1184
  %v1234 = vadd.f32 %v1061, %v1186
  %v1235 = vadd.f32 %v1062, %v1225
  %v1236 = vadd.f32 %v1063, %v1227
  %s1237 = scalar_lea.vmem %s1, 28
  %v1238 = vld [vmem:[%s1237] sm:$0xf]
  %1239 = vrot.lane.b32.xlu0 %v35, 91
  %v1240 = vpop.permute.xlu0 %1239
  %1241 = vrot.lane.b32.xlu0 %v43, 91
  %v1242 = vpop.permute.xlu0 %1241
  %1243 = vrot.lane.b32.xlu0 %v42, 91
  %v1244 = vpop.permute.xlu0 %1243
  %1245 = vrot.lane.b32.xlu0 %v44, 91
  %v1246 = vpop.permute.xlu0 %1245
  %1247 = vrot.lane.b32.xlu0 %v52, 91
  %v1248 = vpop.permute.xlu0 %1247
  %1249 = vrot.lane.b32.xlu0 %v60, 91
  %v1250 = vpop.permute.xlu0 %1249
  %1251 = vrot.lane.b32.xlu0 %v59, 91
  %v1252 = vpop.permute.xlu0 %1251
  %vm1253 = vcmask 744448
  %v1254 = vsel %vm1253, %v1240, %v1242
  %v1255 = vsel %vm1253, %v1242, %v1244
  %v1256 = vsel %vm1253, %v1244, %v1246
  %v1257 = vsel %vm1253, %v1246, %v1248
  %v1258 = vsel %vm1253, %v1248, %v1250
  %v1259 = vsel %vm1253, %v1250, %v1252
  %v1261 = vsel %vm82, %v1238, 0
  %v1264 = vsel %vm86, %v1254, 0
  %v1267 = vsel %vm86, %v1255, 0
  %v1270 = vsel %vm86, %v1256, 0
  %v1273 = vsel %vm86, %v1257, 0
  %v1276 = vsel %vm86, %v1258, 0
  %v1279 = vsel %vm86, %v1259, 0
  %1281 = vmatprep.subr.bf16.mxu0 %v1267
  %1282 = vmatpush1.bf16.msra.mxu0 %v1264
  %1283 = vmatprep.subr.bf16.mxu0 0
  %1284 = vmatpush1.bf16.msra.mxu0 0
  %1285 = vmatprep.subr.bf16.mxu0 0
  %1286 = vmatpush1.bf16.msra.mxu0 0
  %1287 = vmatprep.subr.bf16.mxu0 0
  %1288 = vmatpush1.bf16.msra.mxu0 0
  %1289 = vmatprep.subr.bf16.mxu0 0
  %1290 = vmatpush1.bf16.msra.mxu0 0
  %1291 = vmatprep.subr.bf16.mxu0 0
  %1292 = vmatpush1.bf16.msra.mxu0 0
  %1293 = vmatprep.subr.bf16.mxu0 0
  %1294 = vmatpush1.bf16.msra.mxu0 0
  %1295 = vmatprep.subr.bf16.mxu0 0
  %1296 = vmatpush1.bf16.msra.mxu0 0
  %1297 = vmatprep.subr.bf16.mxu0 0
  %1298 = vmatpush1.bf16.msra.mxu0 0
  %1299 = vmatprep.subr.bf16.mxu0 0
  %1300 = vmatpush1.bf16.msra.mxu0 0
  %1301 = vmatprep.subr.bf16.mxu0 0
  %1302 = vmatpush1.bf16.msra.mxu0 0
  %1303 = vmatprep.subr.bf16.mxu0 0
  %1304 = vmatpush1.bf16.msra.mxu0 0
  %1305 = vmatprep.subr.bf16.mxu0 0
  %1306 = vmatpush1.bf16.msra.mxu0 0
  %1307 = vmatprep.subr.bf16.mxu0 0
  %1308 = vmatpush1.bf16.msra.mxu0 0
  %1309 = vmatprep.subr.bf16.mxu0 0
  %1310 = vmatpush1.bf16.msra.mxu0 0
  %1311 = vmatprep.subr.bf16.mxu0 0
  %1312 = vmatpush1.bf16.msra.mxu0 0
  %1313 = vmatprep.mubr.bf16.mxu0 0
  %1314 = vmatmul.mubr.bf16.gmra.mrb[0].mxu0 %v1261
  %v1315 = vpop.f32.mrb[0].mxu0
  %v1316 = vadd.f32 0.0, %v1315
  %v1317 = vpop.f32.mrb[0].mxu0
  %v1318 = vadd.f32 0.0, %v1317
  %v1319 = vpop.f32.mrb[0].mxu0
  %v1320 = vpop.f32.mrb[0].mxu0
  %1321 = vdwg.mxu0
  %1322 = vmatprep.subr.bf16.mxu0 %v1273
  %1323 = vmatpush1.bf16.msra.mxu0 %v1270
  %1324 = vmatprep.subr.bf16.mxu0 0
  %1325 = vmatpush1.bf16.msra.mxu0 0
  %1326 = vmatprep.subr.bf16.mxu0 0
  %1327 = vmatpush1.bf16.msra.mxu0 0
  %1328 = vmatprep.subr.bf16.mxu0 0
  %1329 = vmatpush1.bf16.msra.mxu0 0
  %1330 = vmatprep.subr.bf16.mxu0 0
  %1331 = vmatpush1.bf16.msra.mxu0 0
  %1332 = vmatprep.subr.bf16.mxu0 0
  %1333 = vmatpush1.bf16.msra.mxu0 0
  %1334 = vmatprep.subr.bf16.mxu0 0
  %1335 = vmatpush1.bf16.msra.mxu0 0
  %1336 = vmatprep.subr.bf16.mxu0 0
  %1337 = vmatpush1.bf16.msra.mxu0 0
  %1338 = vmatprep.subr.bf16.mxu0 0
  %1339 = vmatpush1.bf16.msra.mxu0 0
  %1340 = vmatprep.subr.bf16.mxu0 0
  %1341 = vmatpush1.bf16.msra.mxu0 0
  %1342 = vmatprep.subr.bf16.mxu0 0
  %1343 = vmatpush1.bf16.msra.mxu0 0
  %1344 = vmatprep.subr.bf16.mxu0 0
  %1345 = vmatpush1.bf16.msra.mxu0 0
  %1346 = vmatprep.subr.bf16.mxu0 0
  %1347 = vmatpush1.bf16.msra.mxu0 0
  %1348 = vmatprep.subr.bf16.mxu0 0
  %1349 = vmatpush1.bf16.msra.mxu0 0
  %1350 = vmatprep.subr.bf16.mxu0 0
  %1351 = vmatpush1.bf16.msra.mxu0 0
  %1352 = vmatprep.subr.bf16.mxu0 0
  %1353 = vmatpush1.bf16.msra.mxu0 0
  %1354 = vmatprep.mubr.bf16.mxu0 0
  %1355 = vmatmul.mubr.bf16.gmra.mrb[0].mxu0 %v1261
  %v1356 = vpop.f32.mrb[0].mxu0
  %v1357 = vadd.f32 0.0, %v1356
  %v1358 = vpop.f32.mrb[0].mxu0
  %v1359 = vadd.f32 0.0, %v1358
  %v1360 = vpop.f32.mrb[0].mxu0
  %v1361 = vpop.f32.mrb[0].mxu0
  %1362 = vdwg.mxu0
  %1363 = vmatprep.subr.bf16.mxu0 %v1279
  %1364 = vmatpush1.bf16.msra.mxu0 %v1276
  %1365 = vmatprep.subr.bf16.mxu0 0
  %1366 = vmatpush1.bf16.msra.mxu0 0
  %1367 = vmatprep.subr.bf16.mxu0 0
  %1368 = vmatpush1.bf16.msra.mxu0 0
  %1369 = vmatprep.subr.bf16.mxu0 0
  %1370 = vmatpush1.bf16.msra.mxu0 0
  %1371 = vmatprep.subr.bf16.mxu0 0
  %1372 = vmatpush1.bf16.msra.mxu0 0
  %1373 = vmatprep.subr.bf16.mxu0 0
  %1374 = vmatpush1.bf16.msra.mxu0 0
  %1375 = vmatprep.subr.bf16.mxu0 0
  %1376 = vmatpush1.bf16.msra.mxu0 0
  %1377 = vmatprep.subr.bf16.mxu0 0
  %1378 = vmatpush1.bf16.msra.mxu0 0
  %1379 = vmatprep.subr.bf16.mxu0 0
  %1380 = vmatpush1.bf16.msra.mxu0 0
  %1381 = vmatprep.subr.bf16.mxu0 0
  %1382 = vmatpush1.bf16.msra.mxu0 0
  %1383 = vmatprep.subr.bf16.mxu0 0
  %1384 = vmatpush1.bf16.msra.mxu0 0
  %1385 = vmatprep.subr.bf16.mxu0 0
  %1386 = vmatpush1.bf16.msra.mxu0 0
  %1387 = vmatprep.subr.bf16.mxu0 0
  %1388 = vmatpush1.bf16.msra.mxu0 0
  %1389 = vmatprep.subr.bf16.mxu0 0
  %1390 = vmatpush1.bf16.msra.mxu0 0
  %1391 = vmatprep.subr.bf16.mxu0 0
  %1392 = vmatpush1.bf16.msra.mxu0 0
  %1393 = vmatprep.subr.bf16.mxu0 0
  %1394 = vmatpush1.bf16.msra.mxu0 0
  %1395 = vmatprep.mubr.bf16.mxu0 0
  %1396 = vmatmul.mubr.bf16.gmra.mrb[0].mxu0 %v1261
  %v1397 = vpop.f32.mrb[0].mxu0
  %v1398 = vadd.f32 0.0, %v1397
  %v1399 = vpop.f32.mrb[0].mxu0
  %v1400 = vadd.f32 0.0, %v1399
  %v1401 = vpop.f32.mrb[0].mxu0
  %v1402 = vpop.f32.mrb[0].mxu0
  %1403 = vdwg.mxu0
  %v1404 = vadd.f32 %v1231, %v1316
  %v1405 = vadd.f32 %v1232, %v1318
  %v1406 = vadd.f32 %v1233, %v1357
  %v1407 = vadd.f32 %v1234, %v1359
  %v1408 = vadd.f32 %v1235, %v1398
  %v1409 = vadd.f32 %v1236, %v1400
  %s1410 = scalar_lea.vmem %s1, 32
  %v1411 = vld [vmem:[%s1410] sm:$0xf]
  %1412 = vrot.lane.b32.xlu0 %v35, 90
  %v1413 = vpop.permute.xlu0 %1412
  %1414 = vrot.lane.b32.xlu0 %v43, 90
  %v1415 = vpop.permute.xlu0 %1414
  %1416 = vrot.lane.b32.xlu0 %v42, 90
  %v1417 = vpop.permute.xlu0 %1416
  %1418 = vrot.lane.b32.xlu0 %v44, 90
  %v1419 = vpop.permute.xlu0 %1418
  %1420 = vrot.lane.b32.xlu0 %v52, 90
  %v1421 = vpop.permute.xlu0 %1420
  %1422 = vrot.lane.b32.xlu0 %v60, 90
  %v1423 = vpop.permute.xlu0 %1422
  %1424 = vrot.lane.b32.xlu0 %v59, 90
  %v1425 = vpop.permute.xlu0 %1424
  %vm1426 = vcmask 736256
  %v1427 = vsel %vm1426, %v1413, %v1415
  %v1428 = vsel %vm1426, %v1415, %v1417
  %v1429 = vsel %vm1426, %v1417, %v1419
  %v1430 = vsel %vm1426, %v1419, %v1421
  %v1431 = vsel %vm1426, %v1421, %v1423
  %v1432 = vsel %vm1426, %v1423, %v1425
  %v1434 = vsel %vm82, %v1411, 0
  %v1437 = vsel %vm86, %v1427, 0
  %v1440 = vsel %vm86, %v1428, 0
  %v1443 = vsel %vm86, %v1429, 0
  %v1446 = vsel %vm86, %v1430, 0
  %v1449 = vsel %vm86, %v1431, 0
  %v1452 = vsel %vm86, %v1432, 0
  %1454 = vmatprep.subr.bf16.mxu0 %v1440
  %1455 = vmatpush1.bf16.msra.mxu0 %v1437
  %1456 = vmatprep.subr.bf16.mxu0 0
  %1457 = vmatpush1.bf16.msra.mxu0 0
  %1458 = vmatprep.subr.bf16.mxu0 0
  %1459 = vmatpush1.bf16.msra.mxu0 0
  %1460 = vmatprep.subr.bf16.mxu0 0
  %1461 = vmatpush1.bf16.msra.mxu0 0
  %1462 = vmatprep.subr.bf16.mxu0 0
  %1463 = vmatpush1.bf16.msra.mxu0 0
  %1464 = vmatprep.subr.bf16.mxu0 0
  %1465 = vmatpush1.bf16.msra.mxu0 0
  %1466 = vmatprep.subr.bf16.mxu0 0
  %1467 = vmatpush1.bf16.msra.mxu0 0
  %1468 = vmatprep.subr.bf16.mxu0 0
  %1469 = vmatpush1.bf16.msra.mxu0 0
  %1470 = vmatprep.subr.bf16.mxu0 0
  %1471 = vmatpush1.bf16.msra.mxu0 0
  %1472 = vmatprep.subr.bf16.mxu0 0
  %1473 = vmatpush1.bf16.msra.mxu0 0
  %1474 = vmatprep.subr.bf16.mxu0 0
  %1475 = vmatpush1.bf16.msra.mxu0 0
  %1476 = vmatprep.subr.bf16.mxu0 0
  %1477 = vmatpush1.bf16.msra.mxu0 0
  %1478 = vmatprep.subr.bf16.mxu0 0
  %1479 = vmatpush1.bf16.msra.mxu0 0
  %1480 = vmatprep.subr.bf16.mxu0 0
  %1481 = vmatpush1.bf16.msra.mxu0 0
  %1482 = vmatprep.subr.bf16.mxu0 0
  %1483 = vmatpush1.bf16.msra.mxu0 0
  %1484 = vmatprep.subr.bf16.mxu0 0
  %1485 = vmatpush1.bf16.msra.mxu0 0
  %1486 = vmatprep.mubr.bf16.mxu0 0
  %1487 = vmatmul.mubr.bf16.gmra.mrb[0].mxu0 %v1434
  %v1488 = vpop.f32.mrb[0].mxu0
  %v1489 = vadd.f32 0.0, %v1488
  %v1490 = vpop.f32.mrb[0].mxu0
  %v1491 = vadd.f32 0.0, %v1490
  %v1492 = vpop.f32.mrb[0].mxu0
  %v1493 = vpop.f32.mrb[0].mxu0
  %1494 = vdwg.mxu0
  %1495 = vmatprep.subr.bf16.mxu0 %v1446
  %1496 = vmatpush1.bf16.msra.mxu0 %v1443
  %1497 = vmatprep.subr.bf16.mxu0 0
  %1498 = vmatpush1.bf16.msra.mxu0 0
  %1499 = vmatprep.subr.bf16.mxu0 0
  %1500 = vmatpush1.bf16.msra.mxu0 0
  %1501 = vmatprep.subr.bf16.mxu0 0
  %1502 = vmatpush1.bf16.msra.mxu0 0
  %1503 = vmatprep.subr.bf16.mxu0 0
  %1504 = vmatpush1.bf16.msra.mxu0 0
  %1505 = vmatprep.subr.bf16.mxu0 0
  %1506 = vmatpush1.bf16.msra.mxu0 0
  %1507 = vmatprep.subr.bf16.mxu0 0
  %1508 = vmatpush1.bf16.msra.mxu0 0
  %1509 = vmatprep.subr.bf16.mxu0 0
  %1510 = vmatpush1.bf16.msra.mxu0 0
  %1511 = vmatprep.subr.bf16.mxu0 0
  %1512 = vmatpush1.bf16.msra.mxu0 0
  %1513 = vmatprep.subr.bf16.mxu0 0
  %1514 = vmatpush1.bf16.msra.mxu0 0
  %1515 = vmatprep.subr.bf16.mxu0 0
  %1516 = vmatpush1.bf16.msra.mxu0 0
  %1517 = vmatprep.subr.bf16.mxu0 0
  %1518 = vmatpush1.bf16.msra.mxu0 0
  %1519 = vmatprep.subr.bf16.mxu0 0
  %1520 = vmatpush1.bf16.msra.mxu0 0
  %1521 = vmatprep.subr.bf16.mxu0 0
  %1522 = vmatpush1.bf16.msra.mxu0 0
  %1523 = vmatprep.subr.bf16.mxu0 0
  %1524 = vmatpush1.bf16.msra.mxu0 0
  %1525 = vmatprep.subr.bf16.mxu0 0
  %1526 = vmatpush1.bf16.msra.mxu0 0
  %1527 = vmatprep.mubr.bf16.mxu0 0
  %1528 = vmatmul.mubr.bf16.gmra.mrb[0].mxu0 %v1434
  %v1529 = vpop.f32.mrb[0].mxu0
  %v1530 = vadd.f32 0.0, %v1529
  %v1531 = vpop.f32.mrb[0].mxu0
  %v1532 = vadd.f32 0.0, %v1531
  %v1533 = vpop.f32.mrb[0].mxu0
  %v1534 = vpop.f32.mrb[0].mxu0
  %1535 = vdwg.mxu0
  %1536 = vmatprep.subr.bf16.mxu0 %v1452
  %1537 = vmatpush1.bf16.msra.mxu0 %v1449
  %1538 = vmatprep.subr.bf16.mxu0 0
  %1539 = vmatpush1.bf16.msra.mxu0 0
  %1540 = vmatprep.subr.bf16.mxu0 0
  %1541 = vmatpush1.bf16.msra.mxu0 0
  %1542 = vmatprep.subr.bf16.mxu0 0
  %1543 = vmatpush1.bf16.msra.mxu0 0
  %1544 = vmatprep.subr.bf16.mxu0 0
  %1545 = vmatpush1.bf16.msra.mxu0 0
  %1546 = vmatprep.subr.bf16.mxu0 0
  %1547 = vmatpush1.bf16.msra.mxu0 0
  %1548 = vmatprep.subr.bf16.mxu0 0
  %1549 = vmatpush1.bf16.msra.mxu0 0
  %1550 = vmatprep.subr.bf16.mxu0 0
  %1551 = vmatpush1.bf16.msra.mxu0 0
  %1552 = vmatprep.subr.bf16.mxu0 0
  %1553 = vmatpush1.bf16.msra.mxu0 0
  %1554 = vmatprep.subr.bf16.mxu0 0
  %1555 = vmatpush1.bf16.msra.mxu0 0
  %1556 = vmatprep.subr.bf16.mxu0 0
  %1557 = vmatpush1.bf16.msra.mxu0 0
  %1558 = vmatprep.subr.bf16.mxu0 0
  %1559 = vmatpush1.bf16.msra.mxu0 0
  %1560 = vmatprep.subr.bf16.mxu0 0
  %1561 = vmatpush1.bf16.msra.mxu0 0
  %1562 = vmatprep.subr.bf16.mxu0 0
  %1563 = vmatpush1.bf16.msra.mxu0 0
  %1564 = vmatprep.subr.bf16.mxu0 0
  %1565 = vmatpush1.bf16.msra.mxu0 0
  %1566 = vmatprep.subr.bf16.mxu0 0
  %1567 = vmatpush1.bf16.msra.mxu0 0
  %1568 = vmatprep.mubr.bf16.mxu0 0
  %1569 = vmatmul.mubr.bf16.gmra.mrb[0].mxu0 %v1434
  %v1570 = vpop.f32.mrb[0].mxu0
  %v1571 = vadd.f32 0.0, %v1570
  %v1572 = vpop.f32.mrb[0].mxu0
  %v1573 = vadd.f32 0.0, %v1572
  %v1574 = vpop.f32.mrb[0].mxu0
  %v1575 = vpop.f32.mrb[0].mxu0
  %1576 = vdwg.mxu0
  %v1577 = vadd.f32 %v1404, %v1489
  %v1578 = vadd.f32 %v1405, %v1491
  %v1579 = vadd.f32 %v1406, %v1530
  %v1580 = vadd.f32 %v1407, %v1532
  %v1581 = vadd.f32 %v1408, %v1571
  %v1582 = vadd.f32 %v1409, %v1573
  %v1583 = vld [vmem:[%s2] sm:$0x3f]
  %vm1584 = vcmp.gt.f32.partialorder %v1583, 0.5
  %v1585 = vsel %vm1584, 1, 0
  %v1586 = vlaneseq
  %v1587 = vshrl.u32 %v1586, 7
  %v1588 = vsub.s32 0, %v1587
  %v1589 = vrot.slane %v1585, %v1588
  %v1590 = vlaneseq
  %v1591 = vshrl.u32 %v1590, 7
  %v1592 = vsub.s32 1, %v1591
  %v1593 = vrot.slane %v1585, %v1592
  %v1594 = vlaneseq
  %v1595 = vshrl.u32 %v1594, 7
  %v1596 = vsub.s32 2, %v1595
  %v1597 = vrot.slane %v1585, %v1596
  %v1598 = vlaneseq
  %v1599 = vshrl.u32 %v1598, 7
  %v1600 = vsub.s32 3, %v1599
  %v1601 = vrot.slane %v1585, %v1600
  %v1602 = vlaneseq
  %v1603 = vshrl.u32 %v1602, 7
  %v1604 = vsub.s32 4, %v1603
  %v1605 = vrot.slane %v1585, %v1604
  %v1606 = vlaneseq
  %v1607 = vshrl.u32 %v1606, 7
  %v1608 = vsub.s32 5, %v1607
  %v1609 = vrot.slane %v1585, %v1608
  %vm1610 = vcmp.eq.s32.totalorder %v1589, 1
  %vm1611 = vcmp.eq.s32.totalorder %v1593, 1
  %vm1612 = vcmp.eq.s32.totalorder %v1597, 1
  %vm1613 = vcmp.eq.s32.totalorder %v1601, 1
  %vm1614 = vcmp.eq.s32.totalorder %v1605, 1
  %vm1615 = vcmp.eq.s32.totalorder %v1609, 1
  %v1616 = vsel %vm1610, %v1577, 0.0
  %v1617 = vsel %vm1611, %v1578, 0.0
  %v1618 = vsel %vm1612, %v1579, 0.0
  %v1619 = vsel %vm1613, %v1580, 0.0
  %v1620 = vsel %vm1614, %v1581, 0.0
  %v1621 = vsel %vm1615, %v1582, 0.0
  %v1622 = vadd.f32 %v1616, %v1617
  %v1623 = vadd.f32 %v1622, %v1618
  %v1624 = vadd.f32 %v1623, %v1619
  %v1625 = vadd.f32 %v1624, %v1620
  %v1626 = vadd.f32 %v1625, %v1621
  %1627 = vadd.xlane.f32.xlu0 %v1626
  %v1628 = vpop.xlane.xlu0 %1627
  %v1629 = vmul.f32 %v1628, 0.001953125
  %v1630 = vsub.f32 %v1577, %v1629
  %v1631 = vsub.f32 %v1578, %v1629
  %v1632 = vsub.f32 %v1579, %v1629
  %v1633 = vsub.f32 %v1580, %v1629
  %v1634 = vsub.f32 %v1581, %v1629
  %v1635 = vsub.f32 %v1582, %v1629
  %v1636 = vsel %vm1610, %v1630, 0.0
  %v1637 = vsel %vm1611, %v1631, 0.0
  %v1638 = vsel %vm1612, %v1632, 0.0
  %v1639 = vsel %vm1613, %v1633, 0.0
  %v1640 = vsel %vm1614, %v1634, 0.0
  %v1641 = vsel %vm1615, %v1635, 0.0
  %v1642 = vmul.f32 %v1636, %v1636
  %v1643 = vmul.f32 %v1637, %v1637
  %v1644 = vmul.f32 %v1638, %v1638
  %v1645 = vmul.f32 %v1639, %v1639
  %v1646 = vmul.f32 %v1640, %v1640
  %v1647 = vmul.f32 %v1641, %v1641
  %v1648 = vadd.f32 %v1642, %v1643
  %v1649 = vadd.f32 %v1648, %v1644
  %v1650 = vadd.f32 %v1649, %v1645
  %v1651 = vadd.f32 %v1650, %v1646
  %v1652 = vadd.f32 %v1651, %v1647
  %1653 = vadd.xlane.f32.xlu0 %v1652
  %v1654 = vpop.xlane.xlu0 %1653
  %v1655 = vmul.f32 %v1654, 0.001953125
  %v1656 = vld [vmem:[%s3] sm:$0xff]
  %v1657 = vadd.f32 %v1655, 1e-05
  %v1658 = vrsqrt.pop %v1657
  %v1659 = vmul.f32 %v1656, %v1658
  %v1660 = vld [vmem:[%s4] sm:$0xff]
  %v1661 = vmul.f32 %v1629, %v1659
  %v1662 = vsub.f32 %v1660, %v1661
  %1664 = vset.pattern.permute.xlu0 0
  %1665 = vperm.xlu0 %1664, %v1659
  %v1666 = vpop.permute.xlu0 %1665
  %v1668 = vmul.f32 %v1577, %v1666
  %v1669 = vmul.f32 %v1578, %v1666
  %v1670 = vmul.f32 %v1579, %v1666
  %v1671 = vmul.f32 %v1580, %v1666
  %v1672 = vmul.f32 %v1581, %v1666
  %v1673 = vmul.f32 %v1582, %v1666
  %1675 = vset.pattern.permute.xlu0 0
  %1676 = vperm.xlu0 %1675, %v1662
  %v1677 = vpop.permute.xlu0 %1676
  %v1679 = vadd.f32 %v1668, %v1677
  %v1680 = vadd.f32 %v1669, %v1677
  %v1681 = vadd.f32 %v1670, %v1677
  %v1682 = vadd.f32 %v1671, %v1677
  %v1683 = vadd.f32 %v1672, %v1677
  %v1684 = vadd.f32 %v1673, %v1677
  %v1685 = vmax.f32 %v1679, 0.0
  %v1686 = vmax.f32 %v1680, 0.0
  %v1687 = vmax.f32 %v1681, 0.0
  %v1688 = vmax.f32 %v1682, 0.0
  %v1689 = vmax.f32 %v1683, 0.0
  %v1690 = vmax.f32 %v1684, 0.0
  %1691 = vst [vmem:[%s5] sm:$0xff] %v1685
  %1692 = vst [vmem:[%s5 + $0x8] sm:$0xff] %v1686
  %1693 = vst [vmem:[%s5 + $0x10] sm:$0xff] %v1687
  %1694 = vst [vmem:[%s5 + $0x18] sm:$0xff] %v1688
  %1695 = vst [vmem:[%s5 + $0x20] sm:$0xff] %v1689
  %1696 = vst [vmem:[%s5 + $0x28] sm:$0xff] %v1690
  // Predicated region
  $region22: #{conv_bn_relu.1} parent=0 // pred_check
    _
  $region23: #{conv_bn_relu.1} parent=0 // pred_check_branch
    %1698 = sbr.rel (0) target = $region25
  $region24: #{conv_bn_relu.1} parent=0 // pred_region
    _
  $region25: #{conv_bn_relu.1} parent=0 // pred_fallthru
    _
  // Predicated region
  $region26: #{conv_bn_relu.1} parent=0 // pred_check
    _
  $region27: #{conv_bn_relu.1} parent=0 // pred_check_branch
    %1700 = sbr.rel (0) target = $region29
  $region28: #{conv_bn_relu.1} parent=0 // pred_region
    _
  $region29: #{conv_bn_relu.1} parent=0 // pred_fallthru
    _

</llo_original>
